<compile_context>
chip_gen: v5e
topology: v5e:2x2
jax: 0.10.0
libtpu: 0.0.40
codegen_flags: <defaults>
</compile_context>

<pallas_src>
import functools

import jax
import jax.numpy as jnp
from jax.experimental import pallas as pl
from jax.experimental.pallas import tpu as pltpu


def _sage_mean_body(adj_ref, src_ref, dst_ref, w_refs, b_ref, o_ref,
                    acc_ref, deg_ref, *, tile_k, src_resident, fused):
    """Shared body. Grid = (node tiles i, neighbor/K tiles k); k is the reduction axis."""
    k = pl.program_id(1)

    @pl.when(k == 0)
    def _():
        acc_ref[...] = jnp.zeros_like(acc_ref)
        deg_ref[...] = jnp.zeros_like(deg_ref)

    # int8 0/1 adjacency tile -> bf16 for the MXU (VPU cast hides under the HBM DMA).
    a = adj_ref[...].astype(jnp.bfloat16)

    if src_resident:
        # Full src feature matrix is VMEM-resident; slice out this K slab.
        start = pl.multiple_of(k * tile_k, tile_k)
        src = src_ref[pl.ds(start, tile_k), :]
    else:
        src = src_ref[...]

    # Neighbor-feature partial sum for this K slab (bf16 x bf16 -> f32 accumulate).
    acc_ref[...] += jnp.dot(a, src, preferred_element_type=jnp.float32)
    # In-degree partial sum: widening reduction, no explicit f32 copy of the tile.
    deg_ref[...] += jnp.sum(a, axis=1, keepdims=True, dtype=jnp.float32)

    @pl.when(k == pl.num_programs(1) - 1)
    def _():
        deg = deg_ref[...]                                      # [tile_n, 1] exact counts
        inv_deg = jnp.where(deg > 0.0,
                            pl.reciprocal(jnp.maximum(deg, 1.0), approx=True),
                            0.0)
        neigh = (acc_ref[...] * inv_deg).astype(jnp.bfloat16)   # mean aggregation
        if fused:
            # Single K = 2*F_in combine: [h_self | h_neigh] @ [W_self^T ; W_neigh^T]
            h_cat = jnp.concatenate([dst_ref[...], neigh], axis=-1)
            out = jnp.dot(h_cat, w_refs[0][...], preferred_element_type=jnp.float32)
        else:
            # Two K = F_in dots (preferred on v5e: 128-deep MXU, no concat buffer).
            out = jnp.dot(dst_ref[...], w_refs[0][...], preferred_element_type=jnp.float32)
            out = out + jnp.dot(neigh, w_refs[1][...], preferred_element_type=jnp.float32)
        out = out + b_ref[...]
        o_ref[...] = jnp.maximum(out, 0.0).astype(o_ref.dtype)


def _make_kernel(tile_k, src_resident, fused):
    body = functools.partial(_sage_mean_body, tile_k=tile_k,
                             src_resident=src_resident, fused=fused)
    if fused:
        def kernel(adj_ref, src_ref, dst_ref, w_ref, b_ref, o_ref, acc_ref, deg_ref):
            body(adj_ref, src_ref, dst_ref, (w_ref,), b_ref, o_ref, acc_ref, deg_ref)
    else:
        def kernel(adj_ref, src_ref, dst_ref, ws_ref, wn_ref, b_ref, o_ref,
                   acc_ref, deg_ref):
            body(adj_ref, src_ref, dst_ref, (ws_ref, wn_ref), b_ref, o_ref,
                 acc_ref, deg_ref)
    return kernel


def _default_fuse_combine():
    # v5e's MXU is only 128 deep (4x128^2): the K=2*F_in fused combine buys no fill
    # and costs a [tile_n, 2*F_in] bf16 concat. Keep it for v6e/v7x (256-deep MXU).
    try:
        kind = jax.devices()[0].device_kind.lower()
    except Exception:
        return True
    return "v5" not in kind


def sage_conv_mean_bigraph(adj, feat_src, feat_dst,
                           w_self, b_self, w_neigh, b_neigh,
                           *, tile_n=512, tile_k=2048,
                           fuse_combine=None, src_resident=None,
                           out_dtype=jnp.float32,
                           vmem_limit_bytes=48 * 1024 * 1024):
    """SAGEConv 'mean' aggregator (+ ReLU) forward on a bipartite graph.

    adj:      [N_dst, N_src]  adj[i, j] = 1 if edge src j -> dst i (0/1 valued)
    feat_src: [N_src, F_in]
    feat_dst: [N_dst, F_in]
    w_self, w_neigh: [F_out, F_in]  (PyTorch nn.Linear weight layout)
    b_self, b_neigh: [F_out]
    returns:  [N_dst, F_out]  in out_dtype (default float32)
    """
    N_dst, N_src = adj.shape
    F_in = feat_src.shape[1]
    F_out = w_self.shape[0]
    assert feat_dst.shape == (N_dst, F_in)

    tile_n = min(tile_n, N_dst)
    tile_k = min(tile_k, N_src)
    # Keep >= 2 node tiles so the "parallel" axis can shard across v7x's two
    # TensorCores (harmless extra step overhead on v5e/v6e).
    if N_dst // tile_n < 2:
        half = tile_n // 2
        if half >= 32 and N_dst % half == 0:
            tile_n = half
    assert N_dst % tile_n == 0 and N_src % tile_k == 0, "pad nodes to tile multiples"
    # int8 adjacency tiling constraints (sublane pack = 32, lane = 128).
    assert tile_n == N_dst or tile_n % 32 == 0, "tile_n must be a multiple of 32"
    assert tile_k == N_src or tile_k % 128 == 0, "tile_k must be a multiple of 128"

    if fuse_combine is None:
        fuse_combine = _default_fuse_combine()
    if src_resident is None:
        # Pin the full src feature matrix in VMEM when small; 8 MiB cap keeps the
        # double-buffered footprint safe on v7x's 64 MiB physical VMEM.
        src_resident = (N_src * F_in * 2) <= 8 * 1024 * 1024

    # int8 adjacency is exact (values are 0/1) and halves the dominant HBM stream.
    adj_i8 = adj.astype(jnp.int8)
    src_bf16 = feat_src.astype(jnp.bfloat16)
    dst_bf16 = feat_dst.astype(jnp.bfloat16)
    bias = (jnp.asarray(b_self, jnp.float32)
            + jnp.asarray(b_neigh, jnp.float32)).reshape(1, F_out)
    w_self_t = jnp.asarray(w_self, jnp.float32).T      # [F_in, F_out]
    w_neigh_t = jnp.asarray(w_neigh, jnp.float32).T    # [F_in, F_out]

    grid = (N_dst // tile_n, N_src // tile_k)

    in_specs = [pl.BlockSpec((tile_n, tile_k), lambda i, k: (i, k))]       # adjacency (int8)
    inputs = [adj_i8]
    if src_resident:
        in_specs.append(pl.BlockSpec((N_src, F_in), lambda i, k: (0, 0)))  # resident src
    else:
        in_specs.append(pl.BlockSpec((tile_k, F_in), lambda i, k: (k, 0))) # src K slab
    inputs.append(src_bf16)
    in_specs.append(pl.BlockSpec((tile_n, F_in), lambda i, k: (i, 0)))     # dst (resident over k)
    inputs.append(dst_bf16)
    if fuse_combine:
        w_cat = jnp.concatenate([w_self_t, w_neigh_t], axis=0).astype(jnp.bfloat16)
        in_specs.append(pl.BlockSpec((2 * F_in, F_out), lambda i, k: (0, 0)))
        inputs.append(w_cat)
    else:
        in_specs.append(pl.BlockSpec((F_in, F_out), lambda i, k: (0, 0)))
        in_specs.append(pl.BlockSpec((F_in, F_out), lambda i, k: (0, 0)))
        inputs.append(w_self_t.astype(jnp.bfloat16))
        inputs.append(w_neigh_t.astype(jnp.bfloat16))
    in_specs.append(pl.BlockSpec((1, F_out), lambda i, k: (0, 0)))         # combined bias
    inputs.append(bias)

    kernel = _make_kernel(tile_k, src_resident, fuse_combine)

    return pl.pallas_call(
        kernel,
        out_shape=jax.ShapeDtypeStruct((N_dst, F_out), out_dtype),
        grid_spec=pltpu.PrefetchScalarGridSpec(
            num_scalar_prefetch=0,
            grid=grid,
            in_specs=in_specs,
            out_specs=pl.BlockSpec((tile_n, F_out), lambda i, k: (i, 0)),
            scratch_shapes=[
                pltpu.VMEM((tile_n, F_in), jnp.float32),   # neighbor-sum accumulator
                pltpu.VMEM((tile_n, 1), jnp.float32),      # in-degree accumulator
            ],
        ),
        compiler_params=pltpu.CompilerParams(
            dimension_semantics=("parallel", "arbitrary"),
            vmem_limit_bytes=vmem_limit_bytes),
    )(*inputs)


def xavier_uniform(key, shape, gain):
    fan_out, fan_in = shape
    bound = gain * jnp.sqrt(6.0 / (fan_in + fan_out))
    return jax.random.uniform(key, shape, jnp.float32, -bound, bound)


if __name__ == "__main__":
    # Small deterministic bipartite problem exercising multi-tile node and K axes.
    N_src, N_dst, F_in, F_out = 768, 512, 128, 128
    key = jax.random.PRNGKey(0)
    k_adj, k_fs, k_fd, k_ws, k_wn, k_bs, k_bn = jax.random.split(key, 7)

    # Random ~10%-dense bipartite adjacency: adj[i, j] = 1 iff edge src j -> dst i.
    adj = (jax.random.uniform(k_adj, (N_dst, N_src)) < 0.1).astype(jnp.float32)
    # A few isolated dst nodes to exercise the zero-in-degree guard.
    adj = adj.at[:4, :].set(0.0)
    feat_src = jax.random.normal(k_fs, (N_src, F_in), jnp.float32)
    feat_dst = jax.random.normal(k_fd, (N_dst, F_in), jnp.float32)

    gain = jnp.sqrt(2.0)  # nn.init.calculate_gain('relu')
    w_self = xavier_uniform(k_ws, (F_out, F_in), gain)
    w_neigh = xavier_uniform(k_wn, (F_out, F_in), gain)
    b_bound = 1.0 / jnp.sqrt(F_in)  # nn.Linear default bias init
    b_self = jax.random.uniform(k_bs, (F_out,), jnp.float32, -b_bound, b_bound)
    b_neigh = jax.random.uniform(k_bn, (F_out,), jnp.float32, -b_bound, b_bound)

    # Pure-JAX f32 reference (kernel uses bf16 inputs, hence the loosened tolerance).
    deg = jnp.sum(adj, axis=1, keepdims=True)
    h_neigh = jnp.where(deg > 0, (adj @ feat_src) / jnp.maximum(deg, 1.0), 0.0)
    ref = jnp.maximum(
        feat_dst @ w_self.T + b_self + h_neigh @ w_neigh.T + b_neigh, 0.0)

    # Config A: fused combine + VMEM-resident src features (auto path on v6e/v7x).
    out_a = sage_conv_mean_bigraph(adj, feat_src, feat_dst,
                                   w_self, b_self, w_neigh, b_neigh,
                                   tile_n=128, tile_k=256,
                                   fuse_combine=True, src_resident=True)
    # Config B: split combine + streamed src features (v5e-style path).
    out_b = sage_conv_mean_bigraph(adj, feat_src, feat_dst,
                                   w_self, b_self, w_neigh, b_neigh,
                                   tile_n=128, tile_k=256,
                                   fuse_combine=False, src_resident=False)
    out_a, out_b = jax.block_until_ready((out_a, out_b))

    for out in (out_a, out_b):
        assert out.shape == (N_dst, F_out)
        assert bool(jnp.all(jnp.isfinite(out)))
        max_err = float(jnp.max(jnp.abs(out - ref)))
        assert max_err < 2e-1, f"mismatch vs reference, max_err={max_err}"

    print("KERNEL_OK")
</pallas_src>

<mosaic_0001>
module attributes {stable_mosaic.version = 11 : i64} {
  func.func @kernel(%arg0: i32, %arg1: i32, %arg2: memref<128x256xi8, #tpu.memory_space<vmem>>, %arg3: memref<768x128xbf16, #tpu.memory_space<vmem>>, %arg4: memref<128x128xbf16, #tpu.memory_space<vmem>>, %arg5: memref<256x128xbf16, #tpu.memory_space<vmem>>, %arg6: memref<1x128xf32, #tpu.memory_space<vmem>>, %arg7: memref<128x128xf32, #tpu.memory_space<vmem>>, %arg8: memref<128x128xf32, #tpu.memory_space<vmem>>, %arg9: memref<128x1xf32, #tpu.memory_space<vmem>>) attributes {dimension_semantics = [#tpu.dimension_semantics<parallel>, #tpu.dimension_semantics<arbitrary>], iteration_bounds = array<i64: 4, 3>, scalar_prefetch = 0 : i64, scratch_operands = 2 : i64, tpu.core_type = #tpu.core_type<tc>, window_params = [{transform_indices = @transform_0, window_bounds = array<i64: 128, 256>}, {pipeline_mode = #tpu.pipeline_mode<synchronous>, transform_indices = @transform_1, window_bounds = array<i64: 768, 128>}, {transform_indices = @transform_2, window_bounds = array<i64: 128, 128>}, {pipeline_mode = #tpu.pipeline_mode<synchronous>, transform_indices = @transform_3, window_bounds = array<i64: 256, 128>}, {pipeline_mode = #tpu.pipeline_mode<synchronous>, transform_indices = @transform_4, window_bounds = array<i64: 1, 128>}, {transform_indices = @transform_5, window_bounds = array<i64: 128, 128>}]} {
    %c0_i32 = arith.constant 0 : i32
    %0 = arith.cmpi eq, %arg1, %c0_i32 : i32
    %1 = arith.extui %0 : i1 to i32
    %c0_i32_0 = arith.constant 0 : i32
    %2 = arith.cmpi ne, %1, %c0_i32_0 : i32
    scf.if %2 {
      %cst_13 = arith.constant 0.000000e+00 : f32
      %22 = vector.broadcast %cst_13 : f32 to vector<128x128xf32>
      %c0_14 = arith.constant 0 : index
      %c0_15 = arith.constant 0 : index
      %23 = vector.load %arg8[%c0_14, %c0_15] : memref<128x128xf32, #tpu.memory_space<vmem>>, vector<128x128xf32>
      tpu.vector_store %arg8[%c0_14, %c0_15], %22 {strides = array<i32>} : memref<128x128xf32, #tpu.memory_space<vmem>>, vector<128x128xf32>,
      %cst_16 = arith.constant 0.000000e+00 : f32
      %24 = vector.broadcast %cst_16 : f32 to vector<128x1xf32>
      %c0_17 = arith.constant 0 : index
      %c0_18 = arith.constant 0 : index
      %25 = vector.load %arg9[%c0_17, %c0_18] : memref<128x1xf32, #tpu.memory_space<vmem>>, vector<128x1xf32>
      tpu.vector_store %arg9[%c0_17, %c0_18], %24 {strides = array<i32>} : memref<128x1xf32, #tpu.memory_space<vmem>>, vector<128x1xf32>,
    } else {
    }
    %c0 = arith.constant 0 : index
    %c0_1 = arith.constant 0 : index
    %3 = vector.load %arg2[%c0, %c0_1] : memref<128x256xi8, #tpu.memory_space<vmem>>, vector<128x256xi8>
    %4 = arith.sitofp %3 : vector<128x256xi8> to vector<128x256xbf16>
    %c256_i32 = arith.constant 256 : i32
    %5 = arith.muli %arg1, %c256_i32 : i32
    %6 = tpu.assume_multiple %5, 256 : i32
    %7 = arith.index_cast %6 : i32 to index
    %c0_2 = arith.constant 0 : index
    %8 = vector.load %arg3[%7, %c0_2] : memref<768x128xbf16, #tpu.memory_space<vmem>>, vector<256x128xbf16>
    %c0_3 = arith.constant 0 : index
    %c0_4 = arith.constant 0 : index
    %9 = vector.load %arg8[%c0_3, %c0_4] : memref<128x128xf32, #tpu.memory_space<vmem>>, vector<128x128xf32>
    %cst = arith.constant dense<0.000000e+00> : vector<128x128xf32>
    %10 = tpu.matmul %4, %8, %cst {dimension_numbers = #tpu.dot_dimension_numbers<[1], [0], [0], [1], [0, 0, 1, 1], [], []>} : vector<128x256xbf16>, vector<256x128xbf16>, vector<128x128xf32> -> vector<128x128xf32>
    %11 = arith.addf %9, %10 : vector<128x128xf32>
    %c0_5 = arith.constant 0 : index
    %c0_6 = arith.constant 0 : index
    %12 = vector.load %arg8[%c0_5, %c0_6] : memref<128x128xf32, #tpu.memory_space<vmem>>, vector<128x128xf32>
    tpu.vector_store %arg8[%c0_5, %c0_6], %11 {strides = array<i32>} : memref<128x128xf32, #tpu.memory_space<vmem>>, vector<128x128xf32>,
    %c0_7 = arith.constant 0 : index
    %c0_8 = arith.constant 0 : index
    %13 = vector.load %arg9[%c0_7, %c0_8] : memref<128x1xf32, #tpu.memory_space<vmem>>, vector<128x1xf32>
    %14 = arith.extf %4 : vector<128x256xbf16> to vector<128x256xf32>
    %cst_9 = arith.constant dense<0.000000e+00> : vector<128xf32>
    %15 = vector.multi_reduction <add>, %14, %cst_9 [1] : vector<128x256xf32> to vector<128xf32>
    %16 = vector.shape_cast %15 : vector<128xf32> to vector<128x1xf32>
    %17 = arith.addf %13, %16 : vector<128x1xf32>
    %c0_10 = arith.constant 0 : index
    %c0_11 = arith.constant 0 : index
    %18 = vector.load %arg9[%c0_10, %c0_11] : memref<128x1xf32, #tpu.memory_space<vmem>>, vector<128x1xf32>
    tpu.vector_store %arg9[%c0_10, %c0_11], %17 {strides = array<i32>} : memref<128x1xf32, #tpu.memory_space<vmem>>, vector<128x1xf32>,
    %c2_i32 = arith.constant 2 : i32
    %19 = arith.cmpi eq, %arg1, %c2_i32 : i32
    %20 = arith.extui %19 : i1 to i32
    %c0_i32_12 = arith.constant 0 : i32
    %21 = arith.cmpi ne, %20, %c0_i32_12 : i32
    scf.if %21 {
      %c0_13 = arith.constant 0 : index
      %c0_14 = arith.constant 0 : index
      %22 = vector.load %arg9[%c0_13, %c0_14] : memref<128x1xf32, #tpu.memory_space<vmem>>, vector<128x1xf32>
      %cst_15 = arith.constant 0.000000e+00 : f32
      %23 = vector.broadcast %cst_15 : f32 to vector<128x1xf32>
      %24 = arith.cmpf ogt, %22, %23 : vector<128x1xf32>
      %cst_16 = arith.constant 1.000000e+00 : f32
      %25 = vector.broadcast %cst_16 : f32 to vector<128x1xf32>
      %26 = arith.maximumf %22, %25 : vector<128x1xf32>
      %27 = tpu.reciprocal %26 {approx = true} : vector<128x1xf32> -> vector<128x1xf32>
      %cst_17 = arith.constant 0.000000e+00 : f32
      %28 = vector.broadcast %cst_17 : f32 to vector<128x1xf32>
      %29 = arith.select %24, %27, %28 : vector<128x1xi1>, vector<128x1xf32>
      %c0_18 = arith.constant 0 : index
      %c0_19 = arith.constant 0 : index
      %30 = vector.load %arg8[%c0_18, %c0_19] : memref<128x128xf32, #tpu.memory_space<vmem>>, vector<128x128xf32>
      %31 = vector.broadcast %29 : vector<128x1xf32> to vector<128x128xf32>
      %32 = arith.mulf %30, %31 : vector<128x128xf32>
      %33 = arith.truncf %32 : vector<128x128xf32> to vector<128x128xbf16>
      %c0_20 = arith.constant 0 : index
      %c0_21 = arith.constant 0 : index
      %34 = vector.load %arg4[%c0_20, %c0_21] : memref<128x128xbf16, #tpu.memory_space<vmem>>, vector<128x128xbf16>
      %35 = tpu.concatenate %34, %33 in 1 : vector<128x128xbf16>, vector<128x128xbf16> -> vector<128x256xbf16>
      %c0_22 = arith.constant 0 : index
      %c0_23 = arith.constant 0 : index
      %36 = vector.load %arg5[%c0_22, %c0_23] : memref<256x128xbf16, #tpu.memory_space<vmem>>, vector<256x128xbf16>
      %cst_24 = arith.constant dense<0.000000e+00> : vector<128x128xf32>
      %37 = tpu.matmul %35, %36, %cst_24 {dimension_numbers = #tpu.dot_dimension_numbers<[1], [0], [0], [1], [0, 0, 1, 1], [], []>} : vector<128x256xbf16>, vector<256x128xbf16>, vector<128x128xf32> -> vector<128x128xf32>
      %c0_25 = arith.constant 0 : index
      %c0_26 = arith.constant 0 : index
      %38 = vector.load %arg6[%c0_25, %c0_26] : memref<1x128xf32, #tpu.memory_space<vmem>>, vector<1x128xf32>
      %39 = vector.broadcast %38 : vector<1x128xf32> to vector<128x128xf32>
      %40 = arith.addf %37, %39 : vector<128x128xf32>
      %cst_27 = arith.constant 0.000000e+00 : f32
      %41 = vector.broadcast %cst_27 : f32 to vector<128x128xf32>
      %42 = arith.maximumf %40, %41 : vector<128x128xf32>
      %c0_28 = arith.constant 0 : index
      %c0_29 = arith.constant 0 : index
      %43 = vector.load %arg7[%c0_28, %c0_29] : memref<128x128xf32, #tpu.memory_space<vmem>>, vector<128x128xf32>
      tpu.vector_store %arg7[%c0_28, %c0_29], %42 {strides = array<i32>} : memref<128x128xf32, #tpu.memory_space<vmem>>, vector<128x128xf32>,
    } else {
    }
    return
  }
  func.func @transform_0(%arg0: i32, %arg1: i32) -> (i32, i32) {
    %c0_i32 = arith.constant 0 : i32
    return %arg0, %arg1 : i32, i32
  }
  func.func @transform_1(%arg0: i32, %arg1: i32) -> (i32, i32) {
    %c0_i32 = arith.constant 0 : i32
    %c0_i32_0 = arith.constant 0 : i32
    %c0_i32_1 = arith.constant 0 : i32
    return %c0_i32, %c0_i32_0 : i32, i32
  }
  func.func @transform_2(%arg0: i32, %arg1: i32) -> (i32, i32) {
    %c0_i32 = arith.constant 0 : i32
    %c0_i32_0 = arith.constant 0 : i32
    return %arg0, %c0_i32 : i32, i32
  }
  func.func @transform_3(%arg0: i32, %arg1: i32) -> (i32, i32) {
    %c0_i32 = arith.constant 0 : i32
    %c0_i32_0 = arith.constant 0 : i32
    %c0_i32_1 = arith.constant 0 : i32
    return %c0_i32, %c0_i32_0 : i32, i32
  }
  func.func @transform_4(%arg0: i32, %arg1: i32) -> (i32, i32) {
    %c0_i32 = arith.constant 0 : i32
    %c0_i32_0 = arith.constant 0 : i32
    %c0_i32_1 = arith.constant 0 : i32
    return %c0_i32, %c0_i32_0 : i32, i32
  }
  func.func @transform_5(%arg0: i32, %arg1: i32) -> (i32, i32) {
    %c0_i32 = arith.constant 0 : i32
    %c0_i32_0 = arith.constant 0 : i32
    return %arg0, %c0_i32 : i32, i32
  }
}

</mosaic_0001>

<llo_original>
// kernel: tpu_custom_call.1
$region0: #{tpu_custom_call.1}
  #allocation0 [shape = 'u32[]', space=smem, size = 0x4, offset = 0x4, fixed_abs, tag = 'smem constant byte address 0x4 - core index']
  #allocation1 [shape = 'u32[72,128]{1,0:T(1,128)}', space=vmem, size = 0x9000, scoped, tag = 'internal scratch']
  #allocation2 [shape = 'f32[128,128]{1,0:T(8,128)}', space=vmem, size = 0x10000, scoped, tag = 'scratch operand']
  #allocation3 [shape = 'f32[128,1]{1,0:T(8,128)}', space=vmem, size = 0x10000, scoped, tag = 'scratch operand']
  %s0 = inlined_call_operand.hbm [shape: s8[512,768], index: 0, kind: input, shape index: {}]
  %s1 = inlined_call_operand.hbm [shape: bf16[768,128], index: 1, kind: input, shape index: {}]
  %s2 = inlined_call_operand.hbm [shape: bf16[512,128], index: 2, kind: input, shape index: {}]
  %s3 = inlined_call_operand.hbm [shape: bf16[256,128], index: 3, kind: input, shape index: {}]
  %s4 = inlined_call_operand.vmem [shape: f32[1,128], index: 4, kind: input, shape index: {}]
  %s5 = inlined_call_operand.hbm [shape: f32[512,128], index: 5, kind: output, shape index: {}]
  %s6 = sld [smem:[#allocation0]]
  $region77: #{tpu_custom_call.1} parent=0
    _
  %s8 = ssub.s32 1, %s6
  %s9 = scalar_select 0, %s8, %s6
  $region1: #{tpu_custom_call.1} parent=0
    #allocation4 [shape = 'u8[65536]{0}', space=vmem, size = 0x10000, scoped, tag = 'input window, operand 0']
    #allocation5 [shape = 's32[2]{0}', space=sflag, size = 0x8, scoped, tag = 'scoped memory for tpu_custom_call.1']
    #allocation6 [shape = 's32[2]{0}', space=sflag, size = 0x8, scoped, tag = 'scoped memory for tpu_custom_call.1']
    #allocation7 [shape = 'u8[196608]{0}', space=vmem, size = 0x30000, scoped, tag = 'input window, operand 1, single buffered']
    #allocation8 [shape = 's32[1]{0}', space=sflag, size = 0x4, scoped, tag = 'scoped memory for tpu_custom_call.1']
    #allocation9 [shape = 'u8[65536]{0}', space=vmem, size = 0x10000, scoped, tag = 'input window, operand 2']
    #allocation10 [shape = 'u8[65536]{0}', space=vmem, size = 0x10000, scoped, tag = 'input window, operand 3, single buffered']
    #allocation11 [shape = 'u8[131072]{0}', space=vmem, size = 0x20000, scoped, tag = 'output window, operand 0']
    %10 = vsyncpa [#allocation5], 0
    %s11 = scalar_lea.sflag [#allocation5], 1
    %12 = vsyncpa %s11, 0
    %13 = vsyncpa [#allocation8], 0
    %14 = vsyncpa [#allocation6], 0
    %s15 = scalar_lea.sflag [#allocation6], 1
    %16 = vsyncpa %s15, 0
    loop: start=0, step=1, limit=14
    $region2: #{tpu_custom_call.1} parent=1 // loop_pre_header
      _
    $region3: #{tpu_custom_call.1} parent=1 // loop_header
      %s18 = sphi 0, %s22
      %p19 = scmp.ge.s32.totalorder %s18, 14
      %s25 = sphi 0, %s37
      %s26 = sphi 0, %s33
      %s27 = sphi 0, %s25
      %s28 = sphi 0, %s26
      %s29 = sphi 0, %s27
      %s30 = sphi 0, %s28
      %s42 = sphi 0, %s44
      %s45 = sphi 0, %s42
      %s46 = sphi 0, %s45
      %s62 = sphi 0, %s46
      %s66 = sphi 0, %s66
      %s68 = sphi 0, %s66
      %s69 = sphi 0, %s68
      %s83 = sphi 0, %s69
      %s89 = sphi 0, %s91
      %s92 = sphi 0, %s89
      %s93 = sphi 0, %s92
      %s109 = sphi 0, %s93
      %s113 = sphi 0, %s113
      %s115 = sphi 0, %s113
      %s116 = sphi 0, %s115
      %s130 = sphi 0, %s116
      %s134 = sphi 0, %s134
      %s136 = sphi 0, %s134
      %s137 = sphi 0, %s136
      %s151 = sphi 0, %s137
      %s157 = sphi 0, %s159
      %s160 = sphi 0, %s157
      %s161 = sphi 0, %s160
      %s177 = sphi 0, %s161
    $region4: #{tpu_custom_call.1} parent=1 // loop_header_branch
      %21 = sbr.rel (%p19) target = $region8
    $region5: #{tpu_custom_call.1} parent=1 // loop_body
      %s23 = ssub.s32 %s18, 1
      %s24 = ssub.s32 %s18, 2
      %s31 = sadd.s32 1, %s26
      %p32 = scmp.ge.s32.totalorder %s31, 3
      %s33 = scalar_select %p32, 0, %s31
      %s34 = sadd.s32 1, %s25
      %s35 = scalar_select %p32, %s34, %s25
      %p36 = scmp.ge.s32.totalorder %s35, 4
      %s37 = scalar_select %p36, 0, %s35
      %s38 = ssub.s32 %s25, %s37
      %s39 = ssub.s32 %s26, %s33
      %s40 = sor.u32 %s38, %s39
      %p41 = scmp.eq.s32.totalorder %s40, 0
      %s43 = sadd.s32 %s42, 1
      %s44 = scalar_select %p41, %s42, %s43
      %p47 = pneg %p41
      %p48 = scmp.eq.s32.totalorder %s18, 11
      %p49 = por %p47, %p48
      %p50 = scmp.ne.s32.totalorder %s42, %s45
      %p51 = scmp.eq.s32.totalorder %s18, 0
      %p52 = por %p50, %p51
      %p53 = scmp.ne.s32.totalorder %s42, %s45
      %p54 = scmp.eq.s32.totalorder %s23, 11
      %p55 = por %p53, %p54
      %p56 = scmp.ne.s32.totalorder %s45, %s46
      %p57 = scmp.eq.s32.totalorder %s23, 0
      %p58 = por %p56, %p57
      %p59 = scmp.ne.s32.totalorder %s45, %s46
      %p60 = scmp.eq.s32.totalorder %s24, 11
      %p61 = por %p59, %p60
      %p63 = scmp.ne.s32.totalorder %s46, %s62
      %p64 = scmp.eq.s32.totalorder %s24, 0
      %p65 = por %p63, %p64
      %s67 = sadd.s32 %s66, 1
      %p70 = scmp.eq.s32.totalorder %s18, 11
      %p71 = scmp.ne.s32.totalorder %s66, %s68
      %p72 = scmp.eq.s32.totalorder %s18, 0
      %p73 = por %p71, %p72
      %p74 = scmp.ne.s32.totalorder %s66, %s68
      %p75 = scmp.eq.s32.totalorder %s23, 11
      %p76 = por %p74, %p75
      %p77 = scmp.ne.s32.totalorder %s68, %s69
      %p78 = scmp.eq.s32.totalorder %s23, 0
      %p79 = por %p77, %p78
      %p80 = scmp.ne.s32.totalorder %s68, %s69
      %p81 = scmp.eq.s32.totalorder %s24, 11
      %p82 = por %p80, %p81
      %p84 = scmp.ne.s32.totalorder %s69, %s83
      %p85 = scmp.eq.s32.totalorder %s24, 0
      %p86 = por %p84, %p85
      %s87 = ssub.s32 %s25, %s37
      %p88 = scmp.eq.s32.totalorder %s87, 0
      %s90 = sadd.s32 %s89, 1
      %s91 = scalar_select %p88, %s89, %s90
      %p94 = pneg %p88
      %p95 = scmp.eq.s32.totalorder %s18, 11
      %p96 = por %p94, %p95
      %p97 = scmp.ne.s32.totalorder %s89, %s92
      %p98 = scmp.eq.s32.totalorder %s18, 0
      %p99 = por %p97, %p98
      %p100 = scmp.ne.s32.totalorder %s89, %s92
      %p101 = scmp.eq.s32.totalorder %s23, 11
      %p102 = por %p100, %p101
      %p103 = scmp.ne.s32.totalorder %s92, %s93
      %p104 = scmp.eq.s32.totalorder %s23, 0
      %p105 = por %p103, %p104
      %p106 = scmp.ne.s32.totalorder %s92, %s93
      %p107 = scmp.eq.s32.totalorder %s24, 11
      %p108 = por %p106, %p107
      %p110 = scmp.ne.s32.totalorder %s93, %s109
      %p111 = scmp.eq.s32.totalorder %s24, 0
      %p112 = por %p110, %p111
      %s114 = sadd.s32 %s113, 1
      %p117 = scmp.eq.s32.totalorder %s18, 11
      %p118 = scmp.ne.s32.totalorder %s113, %s115
      %p119 = scmp.eq.s32.totalorder %s18, 0
      %p120 = por %p118, %p119
      %p121 = scmp.ne.s32.totalorder %s113, %s115
      %p122 = scmp.eq.s32.totalorder %s23, 11
      %p123 = por %p121, %p122
      %p124 = scmp.ne.s32.totalorder %s115, %s116
      %p125 = scmp.eq.s32.totalorder %s23, 0
      %p126 = por %p124, %p125
      %p127 = scmp.ne.s32.totalorder %s115, %s116
      %p128 = scmp.eq.s32.totalorder %s24, 11
      %p129 = por %p127, %p128
      %p131 = scmp.ne.s32.totalorder %s116, %s130
      %p132 = scmp.eq.s32.totalorder %s24, 0
      %p133 = por %p131, %p132
      %s135 = sadd.s32 %s134, 1
      %p138 = scmp.eq.s32.totalorder %s18, 11
      %p139 = scmp.ne.s32.totalorder %s134, %s136
      %p140 = scmp.eq.s32.totalorder %s18, 0
      %p141 = por %p139, %p140
      %p142 = scmp.ne.s32.totalorder %s134, %s136
      %p143 = scmp.eq.s32.totalorder %s23, 11
      %p144 = por %p142, %p143
      %p145 = scmp.ne.s32.totalorder %s136, %s137
      %p146 = scmp.eq.s32.totalorder %s23, 0
      %p147 = por %p145, %p146
      %p148 = scmp.ne.s32.totalorder %s136, %s137
      %p149 = scmp.eq.s32.totalorder %s24, 11
      %p150 = por %p148, %p149
      %p152 = scmp.ne.s32.totalorder %s137, %s151
      %p153 = scmp.eq.s32.totalorder %s24, 0
      %p154 = por %p152, %p153
      %s155 = ssub.s32 %s25, %s37
      %p156 = scmp.eq.s32.totalorder %s155, 0
      %s158 = sadd.s32 %s157, 1
      %s159 = scalar_select %p156, %s157, %s158
      %p162 = pneg %p156
      %p163 = scmp.eq.s32.totalorder %s18, 11
      %p164 = por %p162, %p163
      %p165 = scmp.ne.s32.totalorder %s157, %s160
      %p166 = scmp.eq.s32.totalorder %s18, 0
      %p167 = por %p165, %p166
      %p168 = scmp.ne.s32.totalorder %s157, %s160
      %p169 = scmp.eq.s32.totalorder %s23, 11
      %p170 = por %p168, %p169
      %p171 = scmp.ne.s32.totalorder %s160, %s161
      %p172 = scmp.eq.s32.totalorder %s23, 0
      %p173 = por %p171, %p172
      %p174 = scmp.ne.s32.totalorder %s160, %s161
      %p175 = scmp.eq.s32.totalorder %s24, 11
      %p176 = por %p174, %p175
      %p178 = scmp.ne.s32.totalorder %s161, %s177
      %p179 = scmp.eq.s32.totalorder %s24, 0
      %p180 = por %p178, %p179
      %p181 = scmp.le.s32.totalorder 1, %s18
      %p182 = scmp.lt.s32.totalorder %s18, 13
      %p183 = pnand %p181, %p182
      %p184 = pneg %p183
      // Predicated region
      $region9: #{tpu_custom_call.1} parent=5 // pred_check
        _
      $region10: #{tpu_custom_call.1} parent=5 // pred_check_branch
        %186 = sbr.rel (%p183) target = $region12
      $region11: #{tpu_custom_call.1} parent=5 // pred_region
        %s187 = ssub.s32 %s18, 1
        // Predicated region
        $region13: #{tpu_custom_call.1} parent=11 // pred_check
          %p188 = pneg %p79
        $region14: #{tpu_custom_call.1} parent=11 // pred_check_branch
          %190 = sbr.rel (%p188) target = $region16
        $region15: #{tpu_custom_call.1} parent=11 // pred_region
          %192 = vsyncadd [#allocation8], 0
          %s193 = sshll.u32 %s1, 4
          %s194 = int_to_ptr.hbm [resolvable:$true] %s193
          %s195 = sshll.u32 [#allocation7], 4
          %s196 = int_to_ptr.vmem [resolvable:$true] %s195
          %201 = dma.hbm_to_vmem [thread:$0]  %s194, 6144, %s196, [#allocation8], 64, 64, 4
        $region16: #{tpu_custom_call.1} parent=11 // pred_fallthru
          _
        // Predicated region
        $region17: #{tpu_custom_call.1} parent=11 // pred_check
          %p202 = pneg %p126
        $region18: #{tpu_custom_call.1} parent=11 // pred_check_branch
          %204 = sbr.rel (%p202) target = $region20
        $region19: #{tpu_custom_call.1} parent=11 // pred_region
          %206 = vsyncadd [#allocation8], 0
          %s207 = sshll.u32 %s3, 4
          %s208 = int_to_ptr.hbm [resolvable:$true] %s207
          %s209 = sshll.u32 [#allocation10], 4
          %s210 = int_to_ptr.vmem [resolvable:$true] %s209
          %215 = dma.hbm_to_vmem [thread:$0]  %s208, 2048, %s210, [#allocation8], 64, 64, 4
        $region20: #{tpu_custom_call.1} parent=11 // pred_fallthru
          _
        // Predicated region
        $region21: #{tpu_custom_call.1} parent=11 // pred_check
          %p216 = pneg %p147
        $region22: #{tpu_custom_call.1} parent=11 // pred_check_branch
          %218 = sbr.rel (%p216) target = $region24
        $region23: #{tpu_custom_call.1} parent=11 // pred_region
          _
        $region24: #{tpu_custom_call.1} parent=11 // pred_fallthru
          _
      $region12: #{tpu_custom_call.1} parent=5 // pred_fallthru
        _
      %p219 = scmp.lt.s32.totalorder %s18, 12
      // Predicated region
      $region25: #{tpu_custom_call.1} parent=5 // pred_check
        %p220 = pneg %p219
      $region26: #{tpu_custom_call.1} parent=5 // pred_check_branch
        %222 = sbr.rel (%p220) target = $region28
      $region27: #{tpu_custom_call.1} parent=5 // pred_region
        // Predicated region
        $region29: #{tpu_custom_call.1} parent=27 // pred_check
          %p223 = pneg %p52
        $region30: #{tpu_custom_call.1} parent=27 // pred_check_branch
          %225 = sbr.rel (%p223) target = $region32
        $region31: #{tpu_custom_call.1} parent=27 // pred_region
          %s226 = sand.u32 %s18, 1
          %s227 = scalar_lea.sflag [#allocation5], %s226
          %s228 = sand.u32 %s42, 1
          %s229 = smul.addr %s228, 64
          %s230 = scalar_lea.vmem [#allocation4], %s229
          %s231 = smul.u32 4, %s25
          %s232 = smul.u32 2, %s26
          %234 = vsyncadd %s227, 0
          %s235 = smul.addr %s231, 6
          %s236 = sadd.s32 %s232, %s235
          %s237 = smul.addr %s236, 8
          %s238 = scalar_lea.hbm %s0, %s237
          %s239 = sshll.u32 %s238, 4
          %s240 = int_to_ptr.hbm [resolvable:$true] %s239
          %s241 = sshll.u32 %s230, 4
          %s242 = int_to_ptr.vmem [resolvable:$true] %s241
          %247 = dma.hbm_to_vmem [thread:$0]  %s240, 1024, %s242, %s227, 768, 256, 16
        $region32: #{tpu_custom_call.1} parent=27 // pred_fallthru
          _
        // Predicated region
        $region33: #{tpu_custom_call.1} parent=27 // pred_check
          %p248 = pneg %p99
        $region34: #{tpu_custom_call.1} parent=27 // pred_check_branch
          %250 = sbr.rel (%p248) target = $region36
        $region35: #{tpu_custom_call.1} parent=27 // pred_region
          %s251 = sand.u32 %s18, 1
          %s252 = scalar_lea.sflag [#allocation5], %s251
          %s253 = sand.u32 %s89, 1
          %s254 = smul.addr %s253, 64
          %s255 = scalar_lea.vmem [#allocation9], %s254
          %s256 = smul.u32 16, %s25
          %258 = vsyncadd %s252, 0
          %s259 = smul.addr %s256, 4
          %s260 = scalar_lea.hbm %s2, %s259
          %s261 = sshll.u32 %s260, 4
          %s262 = int_to_ptr.hbm [resolvable:$true] %s261
          %s263 = sshll.u32 %s255, 4
          %s264 = int_to_ptr.vmem [resolvable:$true] %s263
          %269 = dma.hbm_to_vmem [thread:$0]  %s262, 1024, %s264, %s252, 64, 64, 4
        $region36: #{tpu_custom_call.1} parent=27 // pred_fallthru
          _
      $region28: #{tpu_custom_call.1} parent=5 // pred_fallthru
        _
      %p270 = scmp.le.s32.totalorder 1, %s18
      %p271 = scmp.lt.s32.totalorder %s18, 13
      %p272 = pnand %p270, %p271
      %p273 = pneg %p272
      // Predicated region
      $region37: #{tpu_custom_call.1} parent=5 // pred_check
        _
      $region38: #{tpu_custom_call.1} parent=5 // pred_check_branch
        %275 = sbr.rel (%p272) target = $region40
      $region39: #{tpu_custom_call.1} parent=5 // pred_region
        %s276 = ssub.s32 %s18, 1
        %s277 = sand.u32 %s23, 1
        %s278 = scalar_lea.sflag [#allocation5], %s277
        %s279 = sand.u32 %s45, 1
        %s280 = smul.addr %s279, 64
        %s281 = scalar_lea.vmem [#allocation4], %s280
        // Predicated region
        $region41: #{tpu_custom_call.1} parent=39 // pred_check
          %p282 = pneg %p58
        $region42: #{tpu_custom_call.1} parent=39 // pred_check_branch
          %284 = sbr.rel (%p282) target = $region44
        $region43: #{tpu_custom_call.1} parent=39 // pred_region
          %286 = dma.done %s278, 1024
        $region44: #{tpu_custom_call.1} parent=39 // pred_fallthru
          _
        // Predicated region
        $region45: #{tpu_custom_call.1} parent=39 // pred_check
          %p287 = pneg %p79
        $region46: #{tpu_custom_call.1} parent=39 // pred_check_branch
          %289 = sbr.rel (%p287) target = $region48
        $region47: #{tpu_custom_call.1} parent=39 // pred_region
          %291 = dma.done [#allocation8], 6144
        $region48: #{tpu_custom_call.1} parent=39 // pred_fallthru
          _
        %s292 = sand.u32 %s23, 1
        %s293 = scalar_lea.sflag [#allocation5], %s292
        %s294 = sand.u32 %s92, 1
        %s295 = smul.addr %s294, 64
        %s296 = scalar_lea.vmem [#allocation9], %s295
        // Predicated region
        $region49: #{tpu_custom_call.1} parent=39 // pred_check
          %p297 = pneg %p105
        $region50: #{tpu_custom_call.1} parent=39 // pred_check_branch
          %299 = sbr.rel (%p297) target = $region52
        $region51: #{tpu_custom_call.1} parent=39 // pred_region
          %301 = dma.done %s293, 1024
        $region52: #{tpu_custom_call.1} parent=39 // pred_fallthru
          _
        // Predicated region
        $region53: #{tpu_custom_call.1} parent=39 // pred_check
          %p302 = pneg %p126
        $region54: #{tpu_custom_call.1} parent=39 // pred_check_branch
          %304 = sbr.rel (%p302) target = $region56
        $region55: #{tpu_custom_call.1} parent=39 // pred_region
          %306 = dma.done [#allocation8], 2048
        $region56: #{tpu_custom_call.1} parent=39 // pred_fallthru
          _
        %s307 = sand.u32 %s23, 1
        %s308 = scalar_lea.sflag [#allocation5], %s307
        %s309 = sand.u32 %s45, 1
        %s310 = smul.addr %s309, 64
        %s311 = scalar_lea.vmem [#allocation4], %s310
        %p312 = pneg %p58
        %p313 = pneg %p55
        %p314 = pneg %p79
        %p315 = pneg %p76
        %s316 = sand.u32 %s23, 1
        %s317 = scalar_lea.sflag [#allocation5], %s316
        %s318 = sand.u32 %s92, 1
        %s319 = smul.addr %s318, 64
        %s320 = scalar_lea.vmem [#allocation9], %s319
        %p321 = pneg %p105
        %p322 = pneg %p102
        %p323 = pneg %p126
        %p324 = pneg %p123
        %p325 = pneg %p147
        %p326 = pneg %p144
        %p327 = pneg %p173
        %p328 = pneg %p170
        %s329 = sand.u32 %s160, 1
        %s330 = scalar_lea.sflag [#allocation6], %s329
        %s331 = sand.u32 %s160, 1
        %s332 = smul.addr %s331, 128
        %s333 = scalar_lea.vmem [#allocation11], %s332
        %s334 = smul.u32 4, %s27
        %s335 = smul.u32 2, %s28
        %s336 = smul.u32 16, %s27
        %s337 = smul.u32 16, %s27
        %p338 = scmp.eq.s32.totalorder %s28, 0
        // Predicated region
        $region57: #{tpu_custom_call.1} parent=39 // pred_check
          %p339 = pneg %p338
        $region58: #{tpu_custom_call.1} parent=39 // pred_check_branch
          %341 = sbr.rel (%p339) target = $region60
        $region59: #{tpu_custom_call.1} parent=39 // pred_region
          %342 = vst [vmem:[#allocation2] sm:$0xff] 0.0
          %343 = vst [vmem:[#allocation2 + $0x8] sm:$0xff] 0.0
          %344 = vst [vmem:[#allocation2 + $0x10] sm:$0xff] 0.0
          %345 = vst [vmem:[#allocation2 + $0x18] sm:$0xff] 0.0
          %346 = vst [vmem:[#allocation2 + $0x20] sm:$0xff] 0.0
          %347 = vst [vmem:[#allocation2 + $0x28] sm:$0xff] 0.0
          %348 = vst [vmem:[#allocation2 + $0x30] sm:$0xff] 0.0
          %349 = vst [vmem:[#allocation2 + $0x38] sm:$0xff] 0.0
          %350 = vst [vmem:[#allocation2 + $0x40] sm:$0xff] 0.0
          %351 = vst [vmem:[#allocation2 + $0x48] sm:$0xff] 0.0
          %352 = vst [vmem:[#allocation2 + $0x50] sm:$0xff] 0.0
          %353 = vst [vmem:[#allocation2 + $0x58] sm:$0xff] 0.0
          %354 = vst [vmem:[#allocation2 + $0x60] sm:$0xff] 0.0
          %355 = vst [vmem:[#allocation2 + $0x68] sm:$0xff] 0.0
          %356 = vst [vmem:[#allocation2 + $0x70] sm:$0xff] 0.0
          %357 = vst [vmem:[#allocation2 + $0x78] sm:$0xff] 0.0
          %vm358 = vcmask 7168
          %359 = vst.msk [vmem:[#allocation3] sm:$0xff] %vm358, 0.0
          %360 = vst.msk [vmem:[#allocation3 + $0x8] sm:$0xff] %vm358, 0.0
          %361 = vst.msk [vmem:[#allocation3 + $0x10] sm:$0xff] %vm358, 0.0
          %362 = vst.msk [vmem:[#allocation3 + $0x18] sm:$0xff] %vm358, 0.0
          %363 = vst.msk [vmem:[#allocation3 + $0x20] sm:$0xff] %vm358, 0.0
          %364 = vst.msk [vmem:[#allocation3 + $0x28] sm:$0xff] %vm358, 0.0
          %365 = vst.msk [vmem:[#allocation3 + $0x30] sm:$0xff] %vm358, 0.0
          %366 = vst.msk [vmem:[#allocation3 + $0x38] sm:$0xff] %vm358, 0.0
          %367 = vst.msk [vmem:[#allocation3 + $0x40] sm:$0xff] %vm358, 0.0
          %368 = vst.msk [vmem:[#allocation3 + $0x48] sm:$0xff] %vm358, 0.0
          %369 = vst.msk [vmem:[#allocation3 + $0x50] sm:$0xff] %vm358, 0.0
          %370 = vst.msk [vmem:[#allocation3 + $0x58] sm:$0xff] %vm358, 0.0
          %371 = vst.msk [vmem:[#allocation3 + $0x60] sm:$0xff] %vm358, 0.0
          %372 = vst.msk [vmem:[#allocation3 + $0x68] sm:$0xff] %vm358, 0.0
          %373 = vst.msk [vmem:[#allocation3 + $0x70] sm:$0xff] %vm358, 0.0
          %374 = vst.msk [vmem:[#allocation3 + $0x78] sm:$0xff] %vm358, 0.0
        $region60: #{tpu_custom_call.1} parent=39 // pred_fallthru
          _
        %v375 = vld [vmem:[%s281] sm:$0xff]
        %v376 = vld [vmem:[%s281 + $0x8] sm:$0xff]
        %v377 = vld [vmem:[%s281 + $0x10] sm:$0xff]
        %v378 = vld [vmem:[%s281 + $0x18] sm:$0xff]
        %v379 = vld [vmem:[%s281 + $0x20] sm:$0xff]
        %v380 = vld [vmem:[%s281 + $0x28] sm:$0xff]
        %v381 = vld [vmem:[%s281 + $0x30] sm:$0xff]
        %v382 = vld [vmem:[%s281 + $0x38] sm:$0xff]
        %v383 = vunpack.c.0.s8 %v375
        %v384 = vunpack.c.0.s8 %v376
        %v385 = vunpack.c.1.s8 %v375
        %v386 = vunpack.c.1.s8 %v376
        %v387 = vunpack.c.2.s8 %v375
        %v388 = vunpack.c.2.s8 %v376
        %v389 = vunpack.c.3.s8 %v375
        %v390 = vunpack.c.3.s8 %v376
        %v391 = vunpack.c.0.s8 %v377
        %v392 = vunpack.c.0.s8 %v378
        %v393 = vunpack.c.1.s8 %v377
        %v394 = vunpack.c.1.s8 %v378
        %v395 = vunpack.c.2.s8 %v377
        %v396 = vunpack.c.2.s8 %v378
        %v397 = vunpack.c.3.s8 %v377
        %v398 = vunpack.c.3.s8 %v378
        %v399 = vunpack.c.0.s8 %v379
        %v400 = vunpack.c.0.s8 %v380
        %v401 = vunpack.c.1.s8 %v379
        %v402 = vunpack.c.1.s8 %v380
        %v403 = vunpack.c.2.s8 %v379
        %v404 = vunpack.c.2.s8 %v380
        %v405 = vunpack.c.3.s8 %v379
        %v406 = vunpack.c.3.s8 %v380
        %v407 = vunpack.c.0.s8 %v381
        %v408 = vunpack.c.0.s8 %v382
        %v409 = vunpack.c.1.s8 %v381
        %v410 = vunpack.c.1.s8 %v382
        %v411 = vunpack.c.2.s8 %v381
        %v412 = vunpack.c.2.s8 %v382
        %v413 = vunpack.c.3.s8 %v381
        %v414 = vunpack.c.3.s8 %v382
        %v415 = vcvt.s32.f32 %v383
        %v416 = vcvt.s32.f32 %v384
        %v417 = vcvt.s32.f32 %v385
        %v418 = vcvt.s32.f32 %v386
        %v419 = vcvt.s32.f32 %v387
        %v420 = vcvt.s32.f32 %v388
        %v421 = vcvt.s32.f32 %v389
        %v422 = vcvt.s32.f32 %v390
        %v423 = vcvt.s32.f32 %v391
        %v424 = vcvt.s32.f32 %v392
        %v425 = vcvt.s32.f32 %v393
        %v426 = vcvt.s32.f32 %v394
        %v427 = vcvt.s32.f32 %v395
        %v428 = vcvt.s32.f32 %v396
        %v429 = vcvt.s32.f32 %v397
        %v430 = vcvt.s32.f32 %v398
        %v431 = vcvt.s32.f32 %v399
        %v432 = vcvt.s32.f32 %v400
        %v433 = vcvt.s32.f32 %v401
        %v434 = vcvt.s32.f32 %v402
        %v435 = vcvt.s32.f32 %v403
        %v436 = vcvt.s32.f32 %v404
        %v437 = vcvt.s32.f32 %v405
        %v438 = vcvt.s32.f32 %v406
        %v439 = vcvt.s32.f32 %v407
        %v440 = vcvt.s32.f32 %v408
        %v441 = vcvt.s32.f32 %v409
        %v442 = vcvt.s32.f32 %v410
        %v443 = vcvt.s32.f32 %v411
        %v444 = vcvt.s32.f32 %v412
        %v445 = vcvt.s32.f32 %v413
        %v446 = vcvt.s32.f32 %v414
        %v447 = vpack.c.bf16 %v417, %v415
        %v448 = vpack.c.bf16 %v418, %v416
        %v449 = vpack.c.bf16 %v421, %v419
        %v450 = vpack.c.bf16 %v422, %v420
        %v451 = vpack.c.bf16 %v425, %v423
        %v452 = vpack.c.bf16 %v426, %v424
        %v453 = vpack.c.bf16 %v429, %v427
        %v454 = vpack.c.bf16 %v430, %v428
        %v455 = vpack.c.bf16 %v433, %v431
        %v456 = vpack.c.bf16 %v434, %v432
        %v457 = vpack.c.bf16 %v437, %v435
        %v458 = vpack.c.bf16 %v438, %v436
        %v459 = vpack.c.bf16 %v441, %v439
        %v460 = vpack.c.bf16 %v442, %v440
        %v461 = vpack.c.bf16 %v445, %v443
        %v462 = vpack.c.bf16 %v446, %v444
        %s463 = smul.u32 %s28, 256
        %s464 = sshra.s32 %s463, 3
        %s465 = sand.u32 %s463, 7
        %s466 = smul.addr %s464, 4
        %s467 = scalar_lea.vmem [#allocation7], %s466
        %v468 = vld [vmem:[%s467] sm:$0xf]
        %v469 = vld [vmem:[%s467 + $0x4] sm:$0xf]
        %v470 = vld [vmem:[%s467 + $0x8] sm:$0xf]
        %v471 = vld [vmem:[%s467 + $0xc] sm:$0xf]
        %v472 = vld [vmem:[%s467 + $0x10] sm:$0xf]
        %v473 = vld [vmem:[%s467 + $0x14] sm:$0xf]
        %v474 = vld [vmem:[%s467 + $0x18] sm:$0xf]
        %v475 = vld [vmem:[%s467 + $0x1c] sm:$0xf]
        %v476 = vld [vmem:[%s467 + $0x20] sm:$0xf]
        %v477 = vld [vmem:[%s467 + $0x24] sm:$0xf]
        %v478 = vld [vmem:[%s467 + $0x28] sm:$0xf]
        %v479 = vld [vmem:[%s467 + $0x2c] sm:$0xf]
        %v480 = vld [vmem:[%s467 + $0x30] sm:$0xf]
        %v481 = vld [vmem:[%s467 + $0x34] sm:$0xf]
        %v482 = vld [vmem:[%s467 + $0x38] sm:$0xf]
        %v483 = vld [vmem:[%s467 + $0x3c] sm:$0xf]
        %v484 = vld [vmem:[%s467 + $0x40] sm:$0xf]
        %v485 = vld [vmem:[%s467 + $0x44] sm:$0xf]
        %v486 = vld [vmem:[%s467 + $0x48] sm:$0xf]
        %v487 = vld [vmem:[%s467 + $0x4c] sm:$0xf]
        %v488 = vld [vmem:[%s467 + $0x50] sm:$0xf]
        %v489 = vld [vmem:[%s467 + $0x54] sm:$0xf]
        %v490 = vld [vmem:[%s467 + $0x58] sm:$0xf]
        %v491 = vld [vmem:[%s467 + $0x5c] sm:$0xf]
        %v492 = vld [vmem:[%s467 + $0x60] sm:$0xf]
        %v493 = vld [vmem:[%s467 + $0x64] sm:$0xf]
        %v494 = vld [vmem:[%s467 + $0x68] sm:$0xf]
        %v495 = vld [vmem:[%s467 + $0x6c] sm:$0xf]
        %v496 = vld [vmem:[%s467 + $0x70] sm:$0xf]
        %v497 = vld [vmem:[%s467 + $0x74] sm:$0xf]
        %v498 = vld [vmem:[%s467 + $0x78] sm:$0xf]
        %v499 = vld [vmem:[%s467 + $0x7c] sm:$0xf]
        %v500 = vld [vmem:[#allocation2] sm:$0xff]
        %v501 = vld [vmem:[#allocation2 + $0x8] sm:$0xff]
        %v502 = vld [vmem:[#allocation2 + $0x10] sm:$0xff]
        %v503 = vld [vmem:[#allocation2 + $0x18] sm:$0xff]
        %v504 = vld [vmem:[#allocation2 + $0x20] sm:$0xff]
        %v505 = vld [vmem:[#allocation2 + $0x28] sm:$0xff]
        %v506 = vld [vmem:[#allocation2 + $0x30] sm:$0xff]
        %v507 = vld [vmem:[#allocation2 + $0x38] sm:$0xff]
        %v508 = vld [vmem:[#allocation2 + $0x40] sm:$0xff]
        %v509 = vld [vmem:[#allocation2 + $0x48] sm:$0xff]
        %v510 = vld [vmem:[#allocation2 + $0x50] sm:$0xff]
        %v511 = vld [vmem:[#allocation2 + $0x58] sm:$0xff]
        %v512 = vld [vmem:[#allocation2 + $0x60] sm:$0xff]
        %v513 = vld [vmem:[#allocation2 + $0x68] sm:$0xff]
        %v514 = vld [vmem:[#allocation2 + $0x70] sm:$0xff]
        %v515 = vld [vmem:[#allocation2 + $0x78] sm:$0xff]
        %v548 = vunpack.c.l.b16 %v468
        %v549 = vunpack.c.l.b16 %v469
        %v550 = vunpack.c.l.b16 %v470
        %v551 = vunpack.c.l.b16 %v471
        %v552 = vunpack.c.l.b16 %v472
        %v553 = vunpack.c.l.b16 %v473
        %v554 = vunpack.c.l.b16 %v474
        %v555 = vunpack.c.l.b16 %v475
        %v556 = vunpack.c.l.b16 %v476
        %v557 = vunpack.c.l.b16 %v477
        %v558 = vunpack.c.l.b16 %v478
        %v559 = vunpack.c.l.b16 %v479
        %v560 = vunpack.c.l.b16 %v480
        %v561 = vunpack.c.l.b16 %v481
        %v562 = vunpack.c.l.b16 %v482
        %v563 = vunpack.c.l.b16 %v483
        %v564 = vunpack.c.l.b16 %v484
        %v565 = vunpack.c.l.b16 %v485
        %v566 = vunpack.c.l.b16 %v486
        %v567 = vunpack.c.l.b16 %v487
        %v568 = vunpack.c.l.b16 %v488
        %v569 = vunpack.c.l.b16 %v489
        %v570 = vunpack.c.l.b16 %v490
        %v571 = vunpack.c.l.b16 %v491
        %v572 = vunpack.c.l.b16 %v492
        %v573 = vunpack.c.l.b16 %v493
        %v574 = vunpack.c.l.b16 %v494
        %v575 = vunpack.c.l.b16 %v495
        %v576 = vunpack.c.l.b16 %v496
        %v577 = vunpack.c.l.b16 %v497
        %v578 = vunpack.c.l.b16 %v498
        %v579 = vunpack.c.l.b16 %v499
        %v580 = vpack.c.b16 %v549, %v548
        %v581 = vpack.c.b16 %v551, %v550
        %v582 = vpack.c.b16 %v553, %v552
        %v583 = vpack.c.b16 %v555, %v554
        %v584 = vpack.c.b16 %v557, %v556
        %v585 = vpack.c.b16 %v559, %v558
        %v586 = vpack.c.b16 %v561, %v560
        %v587 = vpack.c.b16 %v563, %v562
        %v588 = vpack.c.b16 %v565, %v564
        %v589 = vpack.c.b16 %v567, %v566
        %v590 = vpack.c.b16 %v569, %v568
        %v591 = vpack.c.b16 %v571, %v570
        %v592 = vpack.c.b16 %v573, %v572
        %v593 = vpack.c.b16 %v575, %v574
        %v594 = vpack.c.b16 %v577, %v576
        %v595 = vpack.c.b16 %v579, %v578
        %612 = vmatpush.bf16.msra.mxu0 %v587
        %613 = vmatpush.bf16.msra.mxu0 %v586
        %614 = vmatpush.bf16.msra.mxu0 %v585
        %615 = vmatpush.bf16.msra.mxu0 %v584
        %616 = vmatpush.bf16.msra.mxu0 %v583
        %617 = vmatpush.bf16.msra.mxu0 %v582
        %618 = vmatpush.bf16.msra.mxu0 %v581
        %619 = vmatpush.bf16.msra.mxu0 %v580
        %620 = vmatmul.bf16.gmra.mxu0 %v447
        %v621 = vpop.f32.mrf.mxu0
        %v622 = vadd.f32 0.0, %v621
        %v623 = vpop.f32.mrf.mxu0
        %v624 = vadd.f32 0.0, %v623
        %625 = vmatmul.bf16.gmra.mxu0 %v449
        %v626 = vpop.f32.mrf.mxu0
        %v627 = vadd.f32 0.0, %v626
        %v628 = vpop.f32.mrf.mxu0
        %v629 = vadd.f32 0.0, %v628
        %630 = vmatmul.bf16.gmra.mxu0 %v451
        %v631 = vpop.f32.mrf.mxu0
        %v632 = vadd.f32 0.0, %v631
        %v633 = vpop.f32.mrf.mxu0
        %v634 = vadd.f32 0.0, %v633
        %635 = vmatmul.bf16.gmra.mxu0 %v453
        %v636 = vpop.f32.mrf.mxu0
        %v637 = vadd.f32 0.0, %v636
        %v638 = vpop.f32.mrf.mxu0
        %v639 = vadd.f32 0.0, %v638
        %640 = vmatmul.bf16.gmra.mxu0 %v455
        %v641 = vpop.f32.mrf.mxu0
        %v642 = vadd.f32 0.0, %v641
        %v643 = vpop.f32.mrf.mxu0
        %v644 = vadd.f32 0.0, %v643
        %645 = vmatmul.bf16.gmra.mxu0 %v457
        %v646 = vpop.f32.mrf.mxu0
        %v647 = vadd.f32 0.0, %v646
        %v648 = vpop.f32.mrf.mxu0
        %v649 = vadd.f32 0.0, %v648
        %650 = vmatmul.bf16.gmra.mxu0 %v459
        %v651 = vpop.f32.mrf.mxu0
        %v652 = vadd.f32 0.0, %v651
        %v653 = vpop.f32.mrf.mxu0
        %v654 = vadd.f32 0.0, %v653
        %655 = vmatmul.bf16.gmra.mxu0 %v461
        %v656 = vpop.f32.mrf.mxu0
        %v657 = vadd.f32 0.0, %v656
        %v658 = vpop.f32.mrf.mxu0
        %v659 = vadd.f32 0.0, %v658
        %660 = vdwg.mxu0
        %661 = vmatpush.bf16.msra.mxu0 %v595
        %662 = vmatpush.bf16.msra.mxu0 %v594
        %663 = vmatpush.bf16.msra.mxu0 %v593
        %664 = vmatpush.bf16.msra.mxu0 %v592
        %665 = vmatpush.bf16.msra.mxu0 %v591
        %666 = vmatpush.bf16.msra.mxu0 %v590
        %667 = vmatpush.bf16.msra.mxu0 %v589
        %668 = vmatpush.bf16.msra.mxu0 %v588
        %669 = vmatmul.bf16.gmra.mxu0 %v448
        %v670 = vpop.f32.mrf.mxu0
        %v671 = vadd.f32 %v622, %v670
        %v672 = vpop.f32.mrf.mxu0
        %v673 = vadd.f32 %v624, %v672
        %674 = vmatmul.bf16.gmra.mxu0 %v450
        %v675 = vpop.f32.mrf.mxu0
        %v676 = vadd.f32 %v627, %v675
        %v677 = vpop.f32.mrf.mxu0
        %v678 = vadd.f32 %v629, %v677
        %679 = vmatmul.bf16.gmra.mxu0 %v452
        %v680 = vpop.f32.mrf.mxu0
        %v681 = vadd.f32 %v632, %v680
        %v682 = vpop.f32.mrf.mxu0
        %v683 = vadd.f32 %v634, %v682
        %684 = vmatmul.bf16.gmra.mxu0 %v454
        %v685 = vpop.f32.mrf.mxu0
        %v686 = vadd.f32 %v637, %v685
        %v687 = vpop.f32.mrf.mxu0
        %v688 = vadd.f32 %v639, %v687
        %689 = vmatmul.bf16.gmra.mxu0 %v456
        %v690 = vpop.f32.mrf.mxu0
        %v691 = vadd.f32 %v642, %v690
        %v692 = vpop.f32.mrf.mxu0
        %v693 = vadd.f32 %v644, %v692
        %694 = vmatmul.bf16.gmra.mxu0 %v458
        %v695 = vpop.f32.mrf.mxu0
        %v696 = vadd.f32 %v647, %v695
        %v697 = vpop.f32.mrf.mxu0
        %v698 = vadd.f32 %v649, %v697
        %699 = vmatmul.bf16.gmra.mxu0 %v460
        %v700 = vpop.f32.mrf.mxu0
        %v701 = vadd.f32 %v652, %v700
        %v702 = vpop.f32.mrf.mxu0
        %v703 = vadd.f32 %v654, %v702
        %704 = vmatmul.bf16.gmra.mxu0 %v462
        %v705 = vpop.f32.mrf.mxu0
        %v706 = vadd.f32 %v657, %v705
        %v707 = vpop.f32.mrf.mxu0
        %v708 = vadd.f32 %v659, %v707
        %709 = vdwg.mxu0
        %v710 = vadd.f32 %v500, %v671
        %v711 = vadd.f32 %v501, %v673
        %v712 = vadd.f32 %v502, %v676
        %v713 = vadd.f32 %v503, %v678
        %v714 = vadd.f32 %v504, %v681
        %v715 = vadd.f32 %v505, %v683
        %v716 = vadd.f32 %v506, %v686
        %v717 = vadd.f32 %v507, %v688
        %v718 = vadd.f32 %v508, %v691
        %v719 = vadd.f32 %v509, %v693
        %v720 = vadd.f32 %v510, %v696
        %v721 = vadd.f32 %v511, %v698
        %v722 = vadd.f32 %v512, %v701
        %v723 = vadd.f32 %v513, %v703
        %v724 = vadd.f32 %v514, %v706
        %v725 = vadd.f32 %v515, %v708
        %726 = vst [vmem:[#allocation2] sm:$0xff] %v710
        %727 = vst [vmem:[#allocation2 + $0x8] sm:$0xff] %v711
        %728 = vst [vmem:[#allocation2 + $0x10] sm:$0xff] %v712
        %729 = vst [vmem:[#allocation2 + $0x18] sm:$0xff] %v713
        %730 = vst [vmem:[#allocation2 + $0x20] sm:$0xff] %v714
        %731 = vst [vmem:[#allocation2 + $0x28] sm:$0xff] %v715
        %732 = vst [vmem:[#allocation2 + $0x30] sm:$0xff] %v716
        %733 = vst [vmem:[#allocation2 + $0x38] sm:$0xff] %v717
        %734 = vst [vmem:[#allocation2 + $0x40] sm:$0xff] %v718
        %735 = vst [vmem:[#allocation2 + $0x48] sm:$0xff] %v719
        %736 = vst [vmem:[#allocation2 + $0x50] sm:$0xff] %v720
        %737 = vst [vmem:[#allocation2 + $0x58] sm:$0xff] %v721
        %738 = vst [vmem:[#allocation2 + $0x60] sm:$0xff] %v722
        %739 = vst [vmem:[#allocation2 + $0x68] sm:$0xff] %v723
        %740 = vst [vmem:[#allocation2 + $0x70] sm:$0xff] %v724
        %741 = vst [vmem:[#allocation2 + $0x78] sm:$0xff] %v725
        %v742 = vld [vmem:[#allocation3] sm:$0xff]
        %v743 = vld [vmem:[#allocation3 + $0x8] sm:$0xff]
        %v744 = vld [vmem:[#allocation3 + $0x10] sm:$0xff]
        %v745 = vld [vmem:[#allocation3 + $0x18] sm:$0xff]
        %v746 = vld [vmem:[#allocation3 + $0x20] sm:$0xff]
        %v747 = vld [vmem:[#allocation3 + $0x28] sm:$0xff]
        %v748 = vld [vmem:[#allocation3 + $0x30] sm:$0xff]
        %v749 = vld [vmem:[#allocation3 + $0x38] sm:$0xff]
        %v750 = vld [vmem:[#allocation3 + $0x40] sm:$0xff]
        %v751 = vld [vmem:[#allocation3 + $0x48] sm:$0xff]
        %v752 = vld [vmem:[#allocation3 + $0x50] sm:$0xff]
        %v753 = vld [vmem:[#allocation3 + $0x58] sm:$0xff]
        %v754 = vld [vmem:[#allocation3 + $0x60] sm:$0xff]
        %v755 = vld [vmem:[#allocation3 + $0x68] sm:$0xff]
        %v756 = vld [vmem:[#allocation3 + $0x70] sm:$0xff]
        %v757 = vld [vmem:[#allocation3 + $0x78] sm:$0xff]
        %v758 = vunpack.c.l.bf16 %v447
        %v759 = vunpack.c.l.bf16 %v448
        %v760 = vunpack.c.h.bf16 %v447
        %v761 = vunpack.c.h.bf16 %v448
        %v762 = vunpack.c.l.bf16 %v449
        %v763 = vunpack.c.l.bf16 %v450
        %v764 = vunpack.c.h.bf16 %v449
        %v765 = vunpack.c.h.bf16 %v450
        %v766 = vunpack.c.l.bf16 %v451
        %v767 = vunpack.c.l.bf16 %v452
        %v768 = vunpack.c.h.bf16 %v451
        %v769 = vunpack.c.h.bf16 %v452
        %v770 = vunpack.c.l.bf16 %v453
        %v771 = vunpack.c.l.bf16 %v454
        %v772 = vunpack.c.h.bf16 %v453
        %v773 = vunpack.c.h.bf16 %v454
        %v774 = vunpack.c.l.bf16 %v455
        %v775 = vunpack.c.l.bf16 %v456
        %v776 = vunpack.c.h.bf16 %v455
        %v777 = vunpack.c.h.bf16 %v456
        %v778 = vunpack.c.l.bf16 %v457
        %v779 = vunpack.c.l.bf16 %v458
        %v780 = vunpack.c.h.bf16 %v457
        %v781 = vunpack.c.h.bf16 %v458
        %v782 = vunpack.c.l.bf16 %v459
        %v783 = vunpack.c.l.bf16 %v460
        %v784 = vunpack.c.h.bf16 %v459
        %v785 = vunpack.c.h.bf16 %v460
        %v786 = vunpack.c.l.bf16 %v461
        %v787 = vunpack.c.l.bf16 %v462
        %v788 = vunpack.c.h.bf16 %v461
        %v789 = vunpack.c.h.bf16 %v462
        %v790 = vadd.f32 %v758, %v759
        %791 = vadd.xlane.f32.xlu0 %v790
        %v792 = vpop.xlane.xlu0 %791
        %v793 = vadd.f32 %v760, %v761
        %794 = vadd.xlane.f32.xlu0 %v793
        %v795 = vpop.xlane.xlu0 %794
        %v796 = vadd.f32 %v762, %v763
        %797 = vadd.xlane.f32.xlu0 %v796
        %v798 = vpop.xlane.xlu0 %797
        %v799 = vadd.f32 %v764, %v765
        %800 = vadd.xlane.f32.xlu0 %v799
        %v801 = vpop.xlane.xlu0 %800
        %v802 = vadd.f32 %v766, %v767
        %803 = vadd.xlane.f32.xlu0 %v802
        %v804 = vpop.xlane.xlu0 %803
        %v805 = vadd.f32 %v768, %v769
        %806 = vadd.xlane.f32.xlu0 %v805
        %v807 = vpop.xlane.xlu0 %806
        %v808 = vadd.f32 %v770, %v771
        %809 = vadd.xlane.f32.xlu0 %v808
        %v810 = vpop.xlane.xlu0 %809
        %v811 = vadd.f32 %v772, %v773
        %812 = vadd.xlane.f32.xlu0 %v811
        %v813 = vpop.xlane.xlu0 %812
        %v814 = vadd.f32 %v774, %v775
        %815 = vadd.xlane.f32.xlu0 %v814
        %v816 = vpop.xlane.xlu0 %815
        %v817 = vadd.f32 %v776, %v777
        %818 = vadd.xlane.f32.xlu0 %v817
        %v819 = vpop.xlane.xlu0 %818
        %v820 = vadd.f32 %v778, %v779
        %821 = vadd.xlane.f32.xlu0 %v820
        %v822 = vpop.xlane.xlu0 %821
        %v823 = vadd.f32 %v780, %v781
        %824 = vadd.xlane.f32.xlu0 %v823
        %v825 = vpop.xlane.xlu0 %824
        %v826 = vadd.f32 %v782, %v783
        %827 = vadd.xlane.f32.xlu0 %v826
        %v828 = vpop.xlane.xlu0 %827
        %v829 = vadd.f32 %v784, %v785
        %830 = vadd.xlane.f32.xlu0 %v829
        %v831 = vpop.xlane.xlu0 %830
        %v832 = vadd.f32 %v786, %v787
        %833 = vadd.xlane.f32.xlu0 %v832
        %v834 = vpop.xlane.xlu0 %833
        %v835 = vadd.f32 %v788, %v789
        %836 = vadd.xlane.f32.xlu0 %v835
        %v837 = vpop.xlane.xlu0 %836
        %v838 = vadd.f32 %v742, %v792
        %v839 = vadd.f32 %v743, %v795
        %v840 = vadd.f32 %v744, %v798
        %v841 = vadd.f32 %v745, %v801
        %v842 = vadd.f32 %v746, %v804
        %v843 = vadd.f32 %v747, %v807
        %v844 = vadd.f32 %v748, %v810
        %v845 = vadd.f32 %v749, %v813
        %v846 = vadd.f32 %v750, %v816
        %v847 = vadd.f32 %v751, %v819
        %v848 = vadd.f32 %v752, %v822
        %v849 = vadd.f32 %v753, %v825
        %v850 = vadd.f32 %v754, %v828
        %v851 = vadd.f32 %v755, %v831
        %v852 = vadd.f32 %v756, %v834
        %v853 = vadd.f32 %v757, %v837
        %vm854 = vcmask 7168
        %855 = vst.msk [vmem:[#allocation3] sm:$0xff] %vm854, %v838
        %856 = vst.msk [vmem:[#allocation3 + $0x8] sm:$0xff] %vm854, %v839
        %857 = vst.msk [vmem:[#allocation3 + $0x10] sm:$0xff] %vm854, %v840
        %858 = vst.msk [vmem:[#allocation3 + $0x18] sm:$0xff] %vm854, %v841
        %859 = vst.msk [vmem:[#allocation3 + $0x20] sm:$0xff] %vm854, %v842
        %860 = vst.msk [vmem:[#allocation3 + $0x28] sm:$0xff] %vm854, %v843
        %861 = vst.msk [vmem:[#allocation3 + $0x30] sm:$0xff] %vm854, %v844
        %862 = vst.msk [vmem:[#allocation3 + $0x38] sm:$0xff] %vm854, %v845
        %863 = vst.msk [vmem:[#allocation3 + $0x40] sm:$0xff] %vm854, %v846
        %864 = vst.msk [vmem:[#allocation3 + $0x48] sm:$0xff] %vm854, %v847
        %865 = vst.msk [vmem:[#allocation3 + $0x50] sm:$0xff] %vm854, %v848
        %866 = vst.msk [vmem:[#allocation3 + $0x58] sm:$0xff] %vm854, %v849
        %867 = vst.msk [vmem:[#allocation3 + $0x60] sm:$0xff] %vm854, %v850
        %868 = vst.msk [vmem:[#allocation3 + $0x68] sm:$0xff] %vm854, %v851
        %869 = vst.msk [vmem:[#allocation3 + $0x70] sm:$0xff] %vm854, %v852
        %870 = vst.msk [vmem:[#allocation3 + $0x78] sm:$0xff] %vm854, %v853
        %p871 = scmp.eq.s32.totalorder %s28, 2
        // Predicated region
        $region61: #{tpu_custom_call.1} parent=39 // pred_check
          %p872 = pneg %p871
        $region62: #{tpu_custom_call.1} parent=39 // pred_check_branch
          %874 = sbr.rel (%p872) target = $region64
        $region63: #{tpu_custom_call.1} parent=39 // pred_region
          %v875 = vld [vmem:[#allocation3] sm:$0xff]
          %v876 = vld [vmem:[#allocation3 + $0x8] sm:$0xff]
          %v877 = vld [vmem:[#allocation3 + $0x10] sm:$0xff]
          %v878 = vld [vmem:[#allocation3 + $0x18] sm:$0xff]
          %v879 = vld [vmem:[#allocation3 + $0x20] sm:$0xff]
          %v880 = vld [vmem:[#allocation3 + $0x28] sm:$0xff]
          %v881 = vld [vmem:[#allocation3 + $0x30] sm:$0xff]
          %v882 = vld [vmem:[#allocation3 + $0x38] sm:$0xff]
          %v883 = vld [vmem:[#allocation3 + $0x40] sm:$0xff]
          %v884 = vld [vmem:[#allocation3 + $0x48] sm:$0xff]
          %v885 = vld [vmem:[#allocation3 + $0x50] sm:$0xff]
          %v886 = vld [vmem:[#allocation3 + $0x58] sm:$0xff]
          %v887 = vld [vmem:[#allocation3 + $0x60] sm:$0xff]
          %v888 = vld [vmem:[#allocation3 + $0x68] sm:$0xff]
          %v889 = vld [vmem:[#allocation3 + $0x70] sm:$0xff]
          %v890 = vld [vmem:[#allocation3 + $0x78] sm:$0xff]
          %vm891 = vcmp.gt.f32.partialorder %v875, 0.0
          %vm892 = vcmp.gt.f32.partialorder %v876, 0.0
          %vm893 = vcmp.gt.f32.partialorder %v877, 0.0
          %vm894 = vcmp.gt.f32.partialorder %v878, 0.0
          %vm895 = vcmp.gt.f32.partialorder %v879, 0.0
          %vm896 = vcmp.gt.f32.partialorder %v880, 0.0
          %vm897 = vcmp.gt.f32.partialorder %v881, 0.0
          %vm898 = vcmp.gt.f32.partialorder %v882, 0.0
          %vm899 = vcmp.gt.f32.partialorder %v883, 0.0
          %vm900 = vcmp.gt.f32.partialorder %v884, 0.0
          %vm901 = vcmp.gt.f32.partialorder %v885, 0.0
          %vm902 = vcmp.gt.f32.partialorder %v886, 0.0
          %vm903 = vcmp.gt.f32.partialorder %v887, 0.0
          %vm904 = vcmp.gt.f32.partialorder %v888, 0.0
          %vm905 = vcmp.gt.f32.partialorder %v889, 0.0
          %vm906 = vcmp.gt.f32.partialorder %v890, 0.0
          %v907 = vmax.f32 %v875, 1.0
          %v908 = vmax.f32 %v876, 1.0
          %v909 = vmax.f32 %v877, 1.0
          %v910 = vmax.f32 %v878, 1.0
          %v911 = vmax.f32 %v879, 1.0
          %v912 = vmax.f32 %v880, 1.0
          %v913 = vmax.f32 %v881, 1.0
          %v914 = vmax.f32 %v882, 1.0
          %v915 = vmax.f32 %v883, 1.0
          %v916 = vmax.f32 %v884, 1.0
          %v917 = vmax.f32 %v885, 1.0
          %v918 = vmax.f32 %v886, 1.0
          %v919 = vmax.f32 %v887, 1.0
          %v920 = vmax.f32 %v888, 1.0
          %v921 = vmax.f32 %v889, 1.0
          %v922 = vmax.f32 %v890, 1.0
          %v923 = vrcp.pop %v907
          %v924 = vrcp.pop %v908
          %v925 = vrcp.pop %v909
          %v926 = vrcp.pop %v910
          %v927 = vrcp.pop %v911
          %v928 = vrcp.pop %v912
          %v929 = vrcp.pop %v913
          %v930 = vrcp.pop %v914
          %v931 = vrcp.pop %v915
          %v932 = vrcp.pop %v916
          %v933 = vrcp.pop %v917
          %v934 = vrcp.pop %v918
          %v935 = vrcp.pop %v919
          %v936 = vrcp.pop %v920
          %v937 = vrcp.pop %v921
          %v938 = vrcp.pop %v922
          %v939 = vsel %vm891, %v923, 0.0
          %v940 = vsel %vm892, %v924, 0.0
          %v941 = vsel %vm893, %v925, 0.0
          %v942 = vsel %vm894, %v926, 0.0
          %v943 = vsel %vm895, %v927, 0.0
          %v944 = vsel %vm896, %v928, 0.0
          %v945 = vsel %vm897, %v929, 0.0
          %v946 = vsel %vm898, %v930, 0.0
          %v947 = vsel %vm899, %v931, 0.0
          %v948 = vsel %vm900, %v932, 0.0
          %v949 = vsel %vm901, %v933, 0.0
          %v950 = vsel %vm902, %v934, 0.0
          %v951 = vsel %vm903, %v935, 0.0
          %v952 = vsel %vm904, %v936, 0.0
          %v953 = vsel %vm905, %v937, 0.0
          %v954 = vsel %vm906, %v938, 0.0
          %v955 = vld [vmem:[#allocation2] sm:$0xff]
          %v956 = vld [vmem:[#allocation2 + $0x8] sm:$0xff]
          %v957 = vld [vmem:[#allocation2 + $0x10] sm:$0xff]
          %v958 = vld [vmem:[#allocation2 + $0x18] sm:$0xff]
          %v959 = vld [vmem:[#allocation2 + $0x20] sm:$0xff]
          %v960 = vld [vmem:[#allocation2 + $0x28] sm:$0xff]
          %v961 = vld [vmem:[#allocation2 + $0x30] sm:$0xff]
          %v962 = vld [vmem:[#allocation2 + $0x38] sm:$0xff]
          %v963 = vld [vmem:[#allocation2 + $0x40] sm:$0xff]
          %v964 = vld [vmem:[#allocation2 + $0x48] sm:$0xff]
          %v965 = vld [vmem:[#allocation2 + $0x50] sm:$0xff]
          %v966 = vld [vmem:[#allocation2 + $0x58] sm:$0xff]
          %v967 = vld [vmem:[#allocation2 + $0x60] sm:$0xff]
          %v968 = vld [vmem:[#allocation2 + $0x68] sm:$0xff]
          %v969 = vld [vmem:[#allocation2 + $0x70] sm:$0xff]
          %v970 = vld [vmem:[#allocation2 + $0x78] sm:$0xff]
          %972 = vset.pattern.permute.xlu0 0
          %973 = vperm.xlu0 %972, %v939
          %v974 = vpop.permute.xlu0 %973
          %977 = vset.pattern.permute.xlu0 0
          %978 = vperm.xlu0 %977, %v940
          %v979 = vpop.permute.xlu0 %978
          %982 = vset.pattern.permute.xlu0 0
          %983 = vperm.xlu0 %982, %v941
          %v984 = vpop.permute.xlu0 %983
          %987 = vset.pattern.permute.xlu0 0
          %988 = vperm.xlu0 %987, %v942
          %v989 = vpop.permute.xlu0 %988
          %992 = vset.pattern.permute.xlu0 0
          %993 = vperm.xlu0 %992, %v943
          %v994 = vpop.permute.xlu0 %993
          %997 = vset.pattern.permute.xlu0 0
          %998 = vperm.xlu0 %997, %v944
          %v999 = vpop.permute.xlu0 %998
          %1002 = vset.pattern.permute.xlu0 0
          %1003 = vperm.xlu0 %1002, %v945
          %v1004 = vpop.permute.xlu0 %1003
          %1007 = vset.pattern.permute.xlu0 0
          %1008 = vperm.xlu0 %1007, %v946
          %v1009 = vpop.permute.xlu0 %1008
          %1012 = vset.pattern.permute.xlu0 0
          %1013 = vperm.xlu0 %1012, %v947
          %v1014 = vpop.permute.xlu0 %1013
          %1017 = vset.pattern.permute.xlu0 0
          %1018 = vperm.xlu0 %1017, %v948
          %v1019 = vpop.permute.xlu0 %1018
          %1022 = vset.pattern.permute.xlu0 0
          %1023 = vperm.xlu0 %1022, %v949
          %v1024 = vpop.permute.xlu0 %1023
          %1027 = vset.pattern.permute.xlu0 0
          %1028 = vperm.xlu0 %1027, %v950
          %v1029 = vpop.permute.xlu0 %1028
          %1032 = vset.pattern.permute.xlu0 0
          %1033 = vperm.xlu0 %1032, %v951
          %v1034 = vpop.permute.xlu0 %1033
          %1037 = vset.pattern.permute.xlu0 0
          %1038 = vperm.xlu0 %1037, %v952
          %v1039 = vpop.permute.xlu0 %1038
          %1042 = vset.pattern.permute.xlu0 0
          %1043 = vperm.xlu0 %1042, %v953
          %v1044 = vpop.permute.xlu0 %1043
          %1047 = vset.pattern.permute.xlu0 0
          %1048 = vperm.xlu0 %1047, %v954
          %v1049 = vpop.permute.xlu0 %1048
          %v1051 = vmul.f32 %v955, %v974
          %v1052 = vmul.f32 %v956, %v979
          %v1053 = vmul.f32 %v957, %v984
          %v1054 = vmul.f32 %v958, %v989
          %v1055 = vmul.f32 %v959, %v994
          %v1056 = vmul.f32 %v960, %v999
          %v1057 = vmul.f32 %v961, %v1004
          %v1058 = vmul.f32 %v962, %v1009
          %v1059 = vmul.f32 %v963, %v1014
          %v1060 = vmul.f32 %v964, %v1019
          %v1061 = vmul.f32 %v965, %v1024
          %v1062 = vmul.f32 %v966, %v1029
          %v1063 = vmul.f32 %v967, %v1034
          %v1064 = vmul.f32 %v968, %v1039
          %v1065 = vmul.f32 %v969, %v1044
          %v1066 = vmul.f32 %v970, %v1049
          %v1067 = vpack.c.bf16 %v1051, %v1051
          %v1068 = vpack.c.bf16 %v1052, %v1052
          %v1069 = vpack.c.bf16 %v1053, %v1053
          %v1070 = vpack.c.bf16 %v1054, %v1054
          %v1071 = vpack.c.bf16 %v1055, %v1055
          %v1072 = vpack.c.bf16 %v1056, %v1056
          %v1073 = vpack.c.bf16 %v1057, %v1057
          %v1074 = vpack.c.bf16 %v1058, %v1058
          %v1075 = vpack.c.bf16 %v1059, %v1059
          %v1076 = vpack.c.bf16 %v1060, %v1060
          %v1077 = vpack.c.bf16 %v1061, %v1061
          %v1078 = vpack.c.bf16 %v1062, %v1062
          %v1079 = vpack.c.bf16 %v1063, %v1063
          %v1080 = vpack.c.bf16 %v1064, %v1064
          %v1081 = vpack.c.bf16 %v1065, %v1065
          %v1082 = vpack.c.bf16 %v1066, %v1066
          %v1083 = vld [vmem:[%s296] sm:$0xf]
          %v1084 = vld [vmem:[%s296 + $0x4] sm:$0xf]
          %v1085 = vld [vmem:[%s296 + $0x8] sm:$0xf]
          %v1086 = vld [vmem:[%s296 + $0xc] sm:$0xf]
          %v1087 = vld [vmem:[%s296 + $0x10] sm:$0xf]
          %v1088 = vld [vmem:[%s296 + $0x14] sm:$0xf]
          %v1089 = vld [vmem:[%s296 + $0x18] sm:$0xf]
          %v1090 = vld [vmem:[%s296 + $0x1c] sm:$0xf]
          %v1091 = vld [vmem:[%s296 + $0x20] sm:$0xf]
          %v1092 = vld [vmem:[%s296 + $0x24] sm:$0xf]
          %v1093 = vld [vmem:[%s296 + $0x28] sm:$0xf]
          %v1094 = vld [vmem:[%s296 + $0x2c] sm:$0xf]
          %v1095 = vld [vmem:[%s296 + $0x30] sm:$0xf]
          %v1096 = vld [vmem:[%s296 + $0x34] sm:$0xf]
          %v1097 = vld [vmem:[%s296 + $0x38] sm:$0xf]
          %v1098 = vld [vmem:[%s296 + $0x3c] sm:$0xf]
          %v1115 = vunpack.c.l.b16 %v1083
          %v1116 = vunpack.c.l.b16 %v1084
          %v1117 = vunpack.c.l.b16 %v1085
          %v1118 = vunpack.c.l.b16 %v1086
          %v1119 = vunpack.c.l.b16 %v1087
          %v1120 = vunpack.c.l.b16 %v1088
          %v1121 = vunpack.c.l.b16 %v1089
          %v1122 = vunpack.c.l.b16 %v1090
          %v1123 = vunpack.c.l.b16 %v1091
          %v1124 = vunpack.c.l.b16 %v1092
          %v1125 = vunpack.c.l.b16 %v1093
          %v1126 = vunpack.c.l.b16 %v1094
          %v1127 = vunpack.c.l.b16 %v1095
          %v1128 = vunpack.c.l.b16 %v1096
          %v1129 = vunpack.c.l.b16 %v1097
          %v1130 = vunpack.c.l.b16 %v1098
          %v1131 = vpack.c.b16 %v1116, %v1115
          %v1132 = vpack.c.b16 %v1118, %v1117
          %v1133 = vpack.c.b16 %v1120, %v1119
          %v1134 = vpack.c.b16 %v1122, %v1121
          %v1135 = vpack.c.b16 %v1124, %v1123
          %v1136 = vpack.c.b16 %v1126, %v1125
          %v1137 = vpack.c.b16 %v1128, %v1127
          %v1138 = vpack.c.b16 %v1130, %v1129
          %v1163 = vunpack.c.l.b16 %v1067
          %v1164 = vunpack.c.l.b16 %v1068
          %v1165 = vunpack.c.l.b16 %v1069
          %v1166 = vunpack.c.l.b16 %v1070
          %v1167 = vunpack.c.l.b16 %v1071
          %v1168 = vunpack.c.l.b16 %v1072
          %v1169 = vunpack.c.l.b16 %v1073
          %v1170 = vunpack.c.l.b16 %v1074
          %v1171 = vunpack.c.l.b16 %v1075
          %v1172 = vunpack.c.l.b16 %v1076
          %v1173 = vunpack.c.l.b16 %v1077
          %v1174 = vunpack.c.l.b16 %v1078
          %v1175 = vunpack.c.l.b16 %v1079
          %v1176 = vunpack.c.l.b16 %v1080
          %v1177 = vunpack.c.l.b16 %v1081
          %v1178 = vunpack.c.l.b16 %v1082
          %v1179 = vpack.c.b16 %v1164, %v1163
          %v1180 = vpack.c.b16 %v1166, %v1165
          %v1181 = vpack.c.b16 %v1168, %v1167
          %v1182 = vpack.c.b16 %v1170, %v1169
          %v1183 = vpack.c.b16 %v1172, %v1171
          %v1184 = vpack.c.b16 %v1174, %v1173
          %v1185 = vpack.c.b16 %v1176, %v1175
          %v1186 = vpack.c.b16 %v1178, %v1177
          %v1195 = vld [vmem:[#allocation10] sm:$0xf]
          %v1196 = vld [vmem:[#allocation10 + $0x4] sm:$0xf]
          %v1197 = vld [vmem:[#allocation10 + $0x8] sm:$0xf]
          %v1198 = vld [vmem:[#allocation10 + $0xc] sm:$0xf]
          %v1199 = vld [vmem:[#allocation10 + $0x10] sm:$0xf]
          %v1200 = vld [vmem:[#allocation10 + $0x14] sm:$0xf]
          %v1201 = vld [vmem:[#allocation10 + $0x18] sm:$0xf]
          %v1202 = vld [vmem:[#allocation10 + $0x1c] sm:$0xf]
          %v1203 = vld [vmem:[#allocation10 + $0x20] sm:$0xf]
          %v1204 = vld [vmem:[#allocation10 + $0x24] sm:$0xf]
          %v1205 = vld [vmem:[#allocation10 + $0x28] sm:$0xf]
          %v1206 = vld [vmem:[#allocation10 + $0x2c] sm:$0xf]
          %v1207 = vld [vmem:[#allocation10 + $0x30] sm:$0xf]
          %v1208 = vld [vmem:[#allocation10 + $0x34] sm:$0xf]
          %v1209 = vld [vmem:[#allocation10 + $0x38] sm:$0xf]
          %v1210 = vld [vmem:[#allocation10 + $0x3c] sm:$0xf]
          %v1211 = vld [vmem:[#allocation10 + $0x40] sm:$0xf]
          %v1212 = vld [vmem:[#allocation10 + $0x44] sm:$0xf]
          %v1213 = vld [vmem:[#allocation10 + $0x48] sm:$0xf]
          %v1214 = vld [vmem:[#allocation10 + $0x4c] sm:$0xf]
          %v1215 = vld [vmem:[#allocation10 + $0x50] sm:$0xf]
          %v1216 = vld [vmem:[#allocation10 + $0x54] sm:$0xf]
          %v1217 = vld [vmem:[#allocation10 + $0x58] sm:$0xf]
          %v1218 = vld [vmem:[#allocation10 + $0x5c] sm:$0xf]
          %v1219 = vld [vmem:[#allocation10 + $0x60] sm:$0xf]
          %v1220 = vld [vmem:[#allocation10 + $0x64] sm:$0xf]
          %v1221 = vld [vmem:[#allocation10 + $0x68] sm:$0xf]
          %v1222 = vld [vmem:[#allocation10 + $0x6c] sm:$0xf]
          %v1223 = vld [vmem:[#allocation10 + $0x70] sm:$0xf]
          %v1224 = vld [vmem:[#allocation10 + $0x74] sm:$0xf]
          %v1225 = vld [vmem:[#allocation10 + $0x78] sm:$0xf]
          %v1226 = vld [vmem:[#allocation10 + $0x7c] sm:$0xf]
          %v1227 = vld [vmem:[%s4] sm:$0x1]
          %v1229 = vperm.slane %v1227, 0
          %v1263 = vunpack.c.l.b16 %v1195
          %v1264 = vunpack.c.l.b16 %v1196
          %v1265 = vunpack.c.l.b16 %v1197
          %v1266 = vunpack.c.l.b16 %v1198
          %v1267 = vunpack.c.l.b16 %v1199
          %v1268 = vunpack.c.l.b16 %v1200
          %v1269 = vunpack.c.l.b16 %v1201
          %v1270 = vunpack.c.l.b16 %v1202
          %v1271 = vunpack.c.l.b16 %v1203
          %v1272 = vunpack.c.l.b16 %v1204
          %v1273 = vunpack.c.l.b16 %v1205
          %v1274 = vunpack.c.l.b16 %v1206
          %v1275 = vunpack.c.l.b16 %v1207
          %v1276 = vunpack.c.l.b16 %v1208
          %v1277 = vunpack.c.l.b16 %v1209
          %v1278 = vunpack.c.l.b16 %v1210
          %v1279 = vunpack.c.l.b16 %v1211
          %v1280 = vunpack.c.l.b16 %v1212
          %v1281 = vunpack.c.l.b16 %v1213
          %v1282 = vunpack.c.l.b16 %v1214
          %v1283 = vunpack.c.l.b16 %v1215
          %v1284 = vunpack.c.l.b16 %v1216
          %v1285 = vunpack.c.l.b16 %v1217
          %v1286 = vunpack.c.l.b16 %v1218
          %v1287 = vunpack.c.l.b16 %v1219
          %v1288 = vunpack.c.l.b16 %v1220
          %v1289 = vunpack.c.l.b16 %v1221
          %v1290 = vunpack.c.l.b16 %v1222
          %v1291 = vunpack.c.l.b16 %v1223
          %v1292 = vunpack.c.l.b16 %v1224
          %v1293 = vunpack.c.l.b16 %v1225
          %v1294 = vunpack.c.l.b16 %v1226
          %v1295 = vpack.c.b16 %v1264, %v1263
          %v1296 = vpack.c.b16 %v1266, %v1265
          %v1297 = vpack.c.b16 %v1268, %v1267
          %v1298 = vpack.c.b16 %v1270, %v1269
          %v1299 = vpack.c.b16 %v1272, %v1271
          %v1300 = vpack.c.b16 %v1274, %v1273
          %v1301 = vpack.c.b16 %v1276, %v1275
          %v1302 = vpack.c.b16 %v1278, %v1277
          %v1303 = vpack.c.b16 %v1280, %v1279
          %v1304 = vpack.c.b16 %v1282, %v1281
          %v1305 = vpack.c.b16 %v1284, %v1283
          %v1306 = vpack.c.b16 %v1286, %v1285
          %v1307 = vpack.c.b16 %v1288, %v1287
          %v1308 = vpack.c.b16 %v1290, %v1289
          %v1309 = vpack.c.b16 %v1292, %v1291
          %v1310 = vpack.c.b16 %v1294, %v1293
          %1327 = vmatpush.bf16.msra.mxu0 %v1302
          %1328 = vmatpush.bf16.msra.mxu0 %v1301
          %1329 = vmatpush.bf16.msra.mxu0 %v1300
          %1330 = vmatpush.bf16.msra.mxu0 %v1299
          %1331 = vmatpush.bf16.msra.mxu0 %v1298
          %1332 = vmatpush.bf16.msra.mxu0 %v1297
          %1333 = vmatpush.bf16.msra.mxu0 %v1296
          %1334 = vmatpush.bf16.msra.mxu0 %v1295
          %1335 = vmatmul.bf16.gmra.mxu0 %v1131
          %v1336 = vpop.f32.mrf.mxu0
          %v1337 = vadd.f32 %v1229, %v1336
          %v1338 = vpop.f32.mrf.mxu0
          %v1339 = vadd.f32 %v1229, %v1338
          %1340 = vmatmul.bf16.gmra.mxu0 %v1132
          %v1341 = vpop.f32.mrf.mxu0
          %v1342 = vadd.f32 %v1229, %v1341
          %v1343 = vpop.f32.mrf.mxu0
          %v1344 = vadd.f32 %v1229, %v1343
          %1345 = vmatmul.bf16.gmra.mxu0 %v1133
          %v1346 = vpop.f32.mrf.mxu0
          %v1347 = vadd.f32 %v1229, %v1346
          %v1348 = vpop.f32.mrf.mxu0
          %v1349 = vadd.f32 %v1229, %v1348
          %1350 = vmatmul.bf16.gmra.mxu0 %v1134
          %v1351 = vpop.f32.mrf.mxu0
          %v1352 = vadd.f32 %v1229, %v1351
          %v1353 = vpop.f32.mrf.mxu0
          %v1354 = vadd.f32 %v1229, %v1353
          %1355 = vmatmul.bf16.gmra.mxu0 %v1135
          %v1356 = vpop.f32.mrf.mxu0
          %v1357 = vadd.f32 %v1229, %v1356
          %v1358 = vpop.f32.mrf.mxu0
          %v1359 = vadd.f32 %v1229, %v1358
          %1360 = vmatmul.bf16.gmra.mxu0 %v1136
          %v1361 = vpop.f32.mrf.mxu0
          %v1362 = vadd.f32 %v1229, %v1361
          %v1363 = vpop.f32.mrf.mxu0
          %v1364 = vadd.f32 %v1229, %v1363
          %1365 = vmatmul.bf16.gmra.mxu0 %v1137
          %v1366 = vpop.f32.mrf.mxu0
          %v1367 = vadd.f32 %v1229, %v1366
          %v1368 = vpop.f32.mrf.mxu0
          %v1369 = vadd.f32 %v1229, %v1368
          %1370 = vmatmul.bf16.gmra.mxu0 %v1138
          %v1371 = vpop.f32.mrf.mxu0
          %v1372 = vadd.f32 %v1229, %v1371
          %v1373 = vpop.f32.mrf.mxu0
          %v1374 = vadd.f32 %v1229, %v1373
          %1375 = vdwg.mxu0
          %1376 = vmatpush.bf16.msra.mxu0 %v1310
          %1377 = vmatpush.bf16.msra.mxu0 %v1309
          %1378 = vmatpush.bf16.msra.mxu0 %v1308
          %1379 = vmatpush.bf16.msra.mxu0 %v1307
          %1380 = vmatpush.bf16.msra.mxu0 %v1306
          %1381 = vmatpush.bf16.msra.mxu0 %v1305
          %1382 = vmatpush.bf16.msra.mxu0 %v1304
          %1383 = vmatpush.bf16.msra.mxu0 %v1303
          %1384 = vmatmul.bf16.gmra.mxu0 %v1179
          %v1385 = vpop.f32.mrf.mxu0
          %v1386 = vadd.f32 %v1337, %v1385
          %v1387 = vpop.f32.mrf.mxu0
          %v1388 = vadd.f32 %v1339, %v1387
          %1389 = vmatmul.bf16.gmra.mxu0 %v1180
          %v1390 = vpop.f32.mrf.mxu0
          %v1391 = vadd.f32 %v1342, %v1390
          %v1392 = vpop.f32.mrf.mxu0
          %v1393 = vadd.f32 %v1344, %v1392
          %1394 = vmatmul.bf16.gmra.mxu0 %v1181
          %v1395 = vpop.f32.mrf.mxu0
          %v1396 = vadd.f32 %v1347, %v1395
          %v1397 = vpop.f32.mrf.mxu0
          %v1398 = vadd.f32 %v1349, %v1397
          %1399 = vmatmul.bf16.gmra.mxu0 %v1182
          %v1400 = vpop.f32.mrf.mxu0
          %v1401 = vadd.f32 %v1352, %v1400
          %v1402 = vpop.f32.mrf.mxu0
          %v1403 = vadd.f32 %v1354, %v1402
          %1404 = vmatmul.bf16.gmra.mxu0 %v1183
          %v1405 = vpop.f32.mrf.mxu0
          %v1406 = vadd.f32 %v1357, %v1405
          %v1407 = vpop.f32.mrf.mxu0
          %v1408 = vadd.f32 %v1359, %v1407
          %1409 = vmatmul.bf16.gmra.mxu0 %v1184
          %v1410 = vpop.f32.mrf.mxu0
          %v1411 = vadd.f32 %v1362, %v1410
          %v1412 = vpop.f32.mrf.mxu0
          %v1413 = vadd.f32 %v1364, %v1412
          %1414 = vmatmul.bf16.gmra.mxu0 %v1185
          %v1415 = vpop.f32.mrf.mxu0
          %v1416 = vadd.f32 %v1367, %v1415
          %v1417 = vpop.f32.mrf.mxu0
          %v1418 = vadd.f32 %v1369, %v1417
          %1419 = vmatmul.bf16.gmra.mxu0 %v1186
          %v1420 = vpop.f32.mrf.mxu0
          %v1421 = vadd.f32 %v1372, %v1420
          %v1422 = vpop.f32.mrf.mxu0
          %v1423 = vadd.f32 %v1374, %v1422
          %1424 = vdwg.mxu0
          %v1425 = vmax.f32 %v1386, 0.0
          %v1426 = vmax.f32 %v1388, 0.0
          %v1427 = vmax.f32 %v1391, 0.0
          %v1428 = vmax.f32 %v1393, 0.0
          %v1429 = vmax.f32 %v1396, 0.0
          %v1430 = vmax.f32 %v1398, 0.0
          %v1431 = vmax.f32 %v1401, 0.0
          %v1432 = vmax.f32 %v1403, 0.0
          %v1433 = vmax.f32 %v1406, 0.0
          %v1434 = vmax.f32 %v1408, 0.0
          %v1435 = vmax.f32 %v1411, 0.0
          %v1436 = vmax.f32 %v1413, 0.0
          %v1437 = vmax.f32 %v1416, 0.0
          %v1438 = vmax.f32 %v1418, 0.0
          %v1439 = vmax.f32 %v1421, 0.0
          %v1440 = vmax.f32 %v1423, 0.0
          %1441 = vst [vmem:[%s333] sm:$0xff] %v1425
          %1442 = vst [vmem:[%s333 + $0x8] sm:$0xff] %v1426
          %1443 = vst [vmem:[%s333 + $0x10] sm:$0xff] %v1427
          %1444 = vst [vmem:[%s333 + $0x18] sm:$0xff] %v1428
          %1445 = vst [vmem:[%s333 + $0x20] sm:$0xff] %v1429
          %1446 = vst [vmem:[%s333 + $0x28] sm:$0xff] %v1430
          %1447 = vst [vmem:[%s333 + $0x30] sm:$0xff] %v1431
          %1448 = vst [vmem:[%s333 + $0x38] sm:$0xff] %v1432
          %1449 = vst [vmem:[%s333 + $0x40] sm:$0xff] %v1433
          %1450 = vst [vmem:[%s333 + $0x48] sm:$0xff] %v1434
          %1451 = vst [vmem:[%s333 + $0x50] sm:$0xff] %v1435
          %1452 = vst [vmem:[%s333 + $0x58] sm:$0xff] %v1436
          %1453 = vst [vmem:[%s333 + $0x60] sm:$0xff] %v1437
          %1454 = vst [vmem:[%s333 + $0x68] sm:$0xff] %v1438
          %1455 = vst [vmem:[%s333 + $0x70] sm:$0xff] %v1439
          %1456 = vst [vmem:[%s333 + $0x78] sm:$0xff] %v1440
        $region64: #{tpu_custom_call.1} parent=39 // pred_fallthru
          _
        %s1457 = sand.u32 %s160, 1
        %s1458 = scalar_lea.sflag [#allocation6], %s1457
        %s1459 = sand.u32 %s160, 1
        %s1460 = smul.addr %s1459, 128
        %s1461 = scalar_lea.vmem [#allocation11], %s1460
        // Predicated region
        $region65: #{tpu_custom_call.1} parent=39 // pred_check
          %p1462 = pneg %p170
        $region66: #{tpu_custom_call.1} parent=39 // pred_check_branch
          %1464 = sbr.rel (%p1462) target = $region68
        $region67: #{tpu_custom_call.1} parent=39 // pred_region
          %s1465 = smul.u32 16, %s27
          %1467 = vsyncadd %s1458, 0
          %s1468 = smul.addr %s1465, 8
          %s1469 = scalar_lea.hbm %s5, %s1468
          %s1470 = sshll.u32 %s1461, 4
          %s1471 = int_to_ptr.vmem [resolvable:$true] %s1470
          %s1472 = sshll.u32 %s1469, 4
          %s1473 = int_to_ptr.hbm [resolvable:$true] %s1472
          %1478 = dma.vmem_to_hbm [thread:$0]  %s1471, 2048, %s1473, %s1458, 128, 128, 8
        $region68: #{tpu_custom_call.1} parent=39 // pred_fallthru
          _
      $region40: #{tpu_custom_call.1} parent=5 // pred_fallthru
        _
      %p1479 = scmp.le.s32.totalorder 2, %s18
      // Predicated region
      $region69: #{tpu_custom_call.1} parent=5 // pred_check
        %p1480 = pneg %p1479
      $region70: #{tpu_custom_call.1} parent=5 // pred_check_branch
        %1482 = sbr.rel (%p1480) target = $region72
      $region71: #{tpu_custom_call.1} parent=5 // pred_region
        %s1483 = ssub.s32 %s18, 2
        // Predicated region
        $region73: #{tpu_custom_call.1} parent=71 // pred_check
          %p1484 = pneg %p176
        $region74: #{tpu_custom_call.1} parent=71 // pred_check_branch
          %1486 = sbr.rel (%p1484) target = $region76
        $region75: #{tpu_custom_call.1} parent=71 // pred_region
          %s1487 = sand.u32 %s161, 1
          %s1488 = scalar_lea.sflag [#allocation6], %s1487
          %s1489 = sand.u32 %s161, 1
          %s1490 = smul.addr %s1489, 128
          %s1491 = scalar_lea.vmem [#allocation11], %s1490
          %1493 = dma.done %s1488, 2048
        $region76: #{tpu_custom_call.1} parent=71 // pred_fallthru
          _
      $region72: #{tpu_custom_call.1} parent=5 // pred_fallthru
        _
    $region6: #{tpu_custom_call.1} parent=1 // loop_footer
      %s22 = sadd.s32 1, %s18
    $region7: #{tpu_custom_call.1} parent=1 // loop_footer_branch
      %17 = sbr.rel target = $region3
    $region8: #{tpu_custom_call.1} parent=1 // loop_exit
      _
    %1494 = vsyncpa [#allocation5], 1
    %s1495 = scalar_lea.sflag [#allocation5], 1
    %1496 = vsyncpa %s1495, 1
    %1497 = vsyncpa [#allocation8], 1
    %1498 = vsyncpa [#allocation6], 1
    %s1499 = scalar_lea.sflag [#allocation6], 1
    %1500 = vsyncpa %s1499, 1

</llo_original>
